<compile_context>
chip_gen: v7x
topology: tpu7x:2x2x1
jax: 0.10.0
libtpu: 0.0.40
codegen_flags: <defaults>
</compile_context>

<pallas_src>
import numpy as np
import jax
import jax.numpy as jnp
from jax.experimental import pallas as pl
from jax.experimental.pallas import tpu as pltpu


# ----------------------------------------------------------------------------
# Fused forward kernel
# ----------------------------------------------------------------------------

def _make_fused_kernel(cfg):
    n_bot = cfg["n_bot"]
    n_top = cfg["n_top"]
    n_dlrm = cfg["n_dlrm"]
    n_dhe = cfg["n_dhe"]
    B = cfg["batch"]
    L = cfg["lookups"]
    dhe_m = cfg["dhe_m"]          # tuple of num-buckets per DHE stack

    def kernel(*refs):
        pos = 0

        def take():
            nonlocal pos
            r = refs[pos]
            pos += 1
            return r

        x_ref = take()
        bot = [(take(), take()) for _ in range(n_bot)]
        idx_tbl_ref = take() if n_dlrm else None
        emb_w_ref = take() if n_dlrm else None
        dhe = [tuple(take() for _ in range(7)) for _ in range(n_dhe)]
        top = [(take(), take()) for _ in range(n_top)]
        o_ref = take()

        # ---- bottom MLP (ReLU after every layer; en_sigmoid=False) ----------
        h = x_ref[...]
        for (w_ref, b_ref) in bot:
            h = jnp.dot(h, w_ref[...], preferred_element_type=jnp.float32) + b_ref[...]
            h = jnp.maximum(h, 0.0)
        parts = [h]

        # ---- DLRM EmbeddingBag (mode='sum', fixed bag length) ---------------
        # Bag-count matrix (B, Vpad) built from L unrolled column compares,
        # then one MXU matmul replaces the per-row gather loop.  Zero-padded
        # vocab rows are never matched (indices < real vocab) so they're inert.
        for t in range(n_dlrm):
            idx = idx_tbl_ref[t]                  # (B, L)   int32
            w = emb_w_ref[t]                      # (Vpad, D) f32
            V = w.shape[0]
            iota_v = jax.lax.broadcasted_iota(jnp.int32, (B, V), 1)
            counts = jnp.zeros((B, V), jnp.float32)
            for j in range(L):
                counts = counts + (idx[:, j:j + 1] == iota_v).astype(jnp.float32)
            parts.append(jnp.dot(counts, w, preferred_element_type=jnp.float32))

        # ---- DHE stacks: hash encode -> decoder MLP -> per-bag sum pool -----
        for s in range(n_dhe):
            idx_ref, ha_ref, hb_ref, w0_ref, b0_ref, w1_ref, b1_ref = dhe[s]
            m = dhe_m[s]
            # int32 wraparound product == uint32 bit pattern; `& (m-1)` == "% m".
            hsh = jnp.bitwise_and(idx_ref[...] * ha_ref[...] + hb_ref[...], m - 1)
            enc = hsh.astype(jnp.float32) * (2.0 / float(m - 1)) - 1.0   # (B*L, k)
            h1 = jnp.dot(enc, w0_ref[...], preferred_element_type=jnp.float32) + b0_ref[...]
            h1 = jnp.maximum(h1, 0.0)
            h2 = jnp.dot(h1, w1_ref[...], preferred_element_type=jnp.float32) + b1_ref[...]
            # Per-bag sum pool (fixed bag length L) as (B, B*L) @ (B*L, D).
            n = B * L
            row = jax.lax.broadcasted_iota(jnp.int32, (B, n), 0)
            col = jax.lax.broadcasted_iota(jnp.int32, (B, n), 1)
            lo = row * L
            pool = jnp.logical_and(col >= lo, col < lo + L).astype(jnp.float32)
            parts.append(jnp.dot(pool, h2, preferred_element_type=jnp.float32))

        # ---- top MLP: concat folded into layer 0 as row-sliced matmuls ------
        w0_ref, b0_ref = top[0]
        h = b0_ref[...].astype(jnp.float32)       # (1, N0) broadcast on add
        off = 0
        for p in parts:
            k = int(p.shape[1])
            h = h + jnp.dot(p, w0_ref[pl.ds(off, k), :],
                            preferred_element_type=jnp.float32)
            off += k
        h = jax.nn.sigmoid(h) if n_top == 1 else jnp.maximum(h, 0.0)
        for i in range(1, n_top):
            w_ref, b_ref = top[i]
            h = jnp.dot(h, w_ref[...], preferred_element_type=jnp.float32) + b_ref[...]
            h = jax.nn.sigmoid(h) if i == n_top - 1 else jnp.maximum(h, 0.0)

        o_ref[...] = h.astype(o_ref.dtype)

    return kernel


def dlrm_dhe_forward(x_dense, x_indices, params):
    """One fused pallas_call for the whole DLRM_DHE forward."""
    B = int(x_dense.shape[0])
    L = int(x_indices[0].shape[1])

    operands, in_specs = [], []

    def add(arr):
        arr = jnp.asarray(arr)
        nd = arr.ndim
        operands.append(arr)
        # No grid -> index_map takes no args; block == full array.
        in_specs.append(
            pl.BlockSpec(tuple(arr.shape), lambda *_ignored, _nd=nd: (0,) * _nd))

    # Operand order must match the kernel's unpacking order.
    add(x_dense)
    for (w, b) in params["mlp_bot"]:
        add(w)
        add(b.reshape(1, -1))

    n_dlrm = len(params["tables_dlrm"])
    if n_dlrm:
        idx_tbl = jnp.stack([x_indices[i] for i in params["tables_dlrm"]], axis=0)
        add(idx_tbl.astype(jnp.int32))            # (T, B, L)
        add(params["emb_weights_stacked"])        # (T, Vpad, D)

    dhe_m = []
    for tbl_idx, dhe in zip(params["tables_dhe"], params["dhe_stacks"]):
        idx_flat = x_indices[tbl_idx].reshape(B * L, 1).astype(jnp.int32)
        (w0, b0), (w1, b1) = dhe["mlp"]
        add(idx_flat)
        add(dhe["hash_a"])
        add(dhe["hash_b"])
        add(w0)
        add(b0.reshape(1, -1))
        add(w1)
        add(b1.reshape(1, -1))
        dhe_m.append(int(dhe["m"]))

    for (w, b) in params["mlp_top"]:
        add(w)
        add(b.reshape(1, -1))

    n_out = int(params["mlp_top"][-1][0].shape[1])
    cfg = dict(n_bot=len(params["mlp_bot"]), n_top=len(params["mlp_top"]),
               n_dlrm=n_dlrm, n_dhe=len(params["tables_dhe"]),
               batch=B, lookups=L, dhe_m=tuple(dhe_m))

    return pl.pallas_call(
        _make_fused_kernel(cfg),
        out_shape=jax.ShapeDtypeStruct((B, n_out), jnp.float32),
        in_specs=in_specs,
        out_specs=pl.BlockSpec((B, n_out), lambda: (0, 0)),
        compiler_params=pltpu.CompilerParams(vmem_limit_bytes=64 << 20),
    )(*operands)


# ----------------------------------------------------------------------------
# Pure-JAX reference (mirrors the PyTorch module's forward) for validation
# ----------------------------------------------------------------------------

def _reference_forward(x_dense, x_indices, params):
    def mlp(x, layers, en_sigmoid):
        h = x
        for i, (w, b) in enumerate(layers):
            h = jnp.dot(h, w, precision="highest") + b
            if en_sigmoid and i == len(layers) - 1:
                h = jax.nn.sigmoid(h)
            else:
                h = jnp.maximum(h, 0.0)
        return h

    h_bot = mlp(x_dense, params["mlp_bot"], en_sigmoid=False)

    embs = []
    for t, i in enumerate(params["tables_dlrm"]):
        w = params["emb_weights_stacked"][t]
        embs.append(jnp.take(w, x_indices[i], axis=0).sum(axis=1))

    for tbl_idx, dhe in zip(params["tables_dhe"], params["dhe_stacks"]):
        idx = x_indices[tbl_idx].astype(jnp.int32)[..., None]       # (B, L, 1)
        m = int(dhe["m"])
        hsh = jnp.bitwise_and(idx * dhe["hash_a"][0] + dhe["hash_b"][0], m - 1)
        enc = hsh.astype(jnp.float32) * (2.0 / float(m - 1)) - 1.0  # (B, L, k)
        (w0, b0), (w1, b1) = dhe["mlp"]
        h1 = jnp.maximum(jnp.dot(enc, w0, precision="highest") + b0, 0.0)
        h2 = jnp.dot(h1, w1, precision="highest") + b1
        embs.append(h2.sum(axis=1))

    cat = jnp.concatenate([h_bot] + embs, axis=1)
    return mlp(cat, params["mlp_top"], en_sigmoid=True)


# ----------------------------------------------------------------------------
# Parameter construction (mirrors DLRM_DHE.__init__ formulas)
# ----------------------------------------------------------------------------

def init_mlp(rng, dims):
    """Mirrors DLRM_DHE.create_mlp init; returns [(W(in,out), b(out,))]."""
    layers = []
    for i in range(len(dims) - 1):
        din, dout = int(dims[i]), int(dims[i + 1])
        sigma_w = np.sqrt(2.0 / (din + dout))
        sigma_b = np.sqrt(1.0 / dout)
        w = rng.normal(0.0, sigma_w, size=(dout, din)).astype(np.float32)
        b = rng.normal(0.0, sigma_b, size=(dout,)).astype(np.float32)
        layers.append((jnp.asarray(w.T), jnp.asarray(b)))   # stored (in, out)
    return layers


# ----------------------------------------------------------------------------
# Main
# ----------------------------------------------------------------------------

if __name__ == "__main__":
    # Small DLRM_DHE configuration.
    batch = 4
    dense_dim = 16
    emb_dim = 16
    mlp_bot_dims = [dense_dim, 32, emb_dim]
    mlp_top_tail = [32, 1]
    table_sizes = [50, 200, 60]
    num_lookups = 8
    table_size_threshold = 100       # table 1 -> DHE, tables 0, 2 -> EmbeddingBag
    dhe_k, dhe_m, dhe_hidden = 16, 1024, 32

    tables_dhe = [i for i, ts in enumerate(table_sizes) if ts > table_size_threshold]
    tables_dlrm = [i for i, ts in enumerate(table_sizes) if ts <= table_size_threshold]

    rng = np.random.default_rng(0)
    mlp_top_dims = [emb_dim * (1 + len(table_sizes))] + mlp_top_tail

    params = {
        "mlp_bot": init_mlp(rng, mlp_bot_dims),
        "mlp_top": init_mlp(rng, mlp_top_dims),
        "tables_dlrm": tables_dlrm,
        "tables_dhe": tables_dhe,
        "dhe_stacks": [],
        "emb_weights_stacked": None,
    }

    # DLRM EmbeddingBag tables, stacked + zero-padded to a common vocab so one
    # fused kernel handles all of them with static-indexed slices.
    if tables_dlrm:
        v_max = max(table_sizes[i] for i in tables_dlrm)
        v_pad = -(-v_max // 8) * 8
        w_stack = np.zeros((len(tables_dlrm), v_pad, emb_dim), np.float32)
        for t, i in enumerate(tables_dlrm):
            size = table_sizes[i]
            bound = np.sqrt(1.0 / size)
            w_stack[t, :size] = rng.uniform(
                -bound, bound, size=(size, emb_dim)).astype(np.float32)
        params["emb_weights_stacked"] = jnp.asarray(w_stack)

    # TODO(synk): DHEBag source is not provided in the reference file; this is
    # the canonical Deep-Hash-Embedding bag (k universal hashes -> dense
    # encoding -> MLP decoder -> per-bag sum pool), not a bit-exact copy.
    for _ in tables_dhe:
        hash_a = (rng.integers(1, 2**30, size=dhe_k, dtype=np.int64) * 2 + 1).astype(np.int32)
        hash_b = rng.integers(0, 2**31, size=dhe_k, dtype=np.int64).astype(np.int32)
        params["dhe_stacks"].append({
            "hash_a": jnp.asarray(hash_a.reshape(1, dhe_k)),
            "hash_b": jnp.asarray(hash_b.reshape(1, dhe_k)),
            "m": dhe_m,
            "mlp": init_mlp(rng, [dhe_k, dhe_hidden, emb_dim]),
        })

    # Deterministic inputs.  Fixed-length bags: offsets are implicitly
    # arange(batch) * num_lookups (the reference module's x_offsets).
    key = jax.random.PRNGKey(0)
    k_dense, k_idx = jax.random.split(key)
    x_dense = jax.random.normal(k_dense, (batch, dense_dim), dtype=jnp.float32)
    x_indices = []
    idx_keys = jax.random.split(k_idx, len(table_sizes))
    for t, ts in enumerate(table_sizes):
        x_indices.append(
            jax.random.randint(idx_keys[t], (batch, num_lookups), 0, ts, dtype=jnp.int32))

    out = dlrm_dhe_forward(x_dense, x_indices, params)
    out = jax.block_until_ready(out)

    assert out.shape == (batch, 1) and out.dtype == jnp.float32
    assert bool(jnp.all(jnp.isfinite(out)))

    ref = jax.block_until_ready(_reference_forward(x_dense, x_indices, params))
    np.testing.assert_allclose(np.asarray(out), np.asarray(ref), rtol=2e-3, atol=2e-3)

    print("KERNEL_OK")
</pallas_src>

<mosaic_0001>
module attributes {stable_mosaic.version = 11 : i64} {
  func.func @kernel(%arg0: memref<4x16xf32, #tpu.memory_space<vmem>>, %arg1: memref<16x32xf32, #tpu.memory_space<vmem>>, %arg2: memref<1x32xf32, #tpu.memory_space<vmem>>, %arg3: memref<32x16xf32, #tpu.memory_space<vmem>>, %arg4: memref<1x16xf32, #tpu.memory_space<vmem>>, %arg5: memref<2x4x8xi32, #tpu.memory_space<vmem>>, %arg6: memref<2x64x16xf32, #tpu.memory_space<vmem>>, %arg7: memref<32x1xi32, #tpu.memory_space<vmem>>, %arg8: memref<1x16xi32, #tpu.memory_space<vmem>>, %arg9: memref<1x16xi32, #tpu.memory_space<vmem>>, %arg10: memref<16x32xf32, #tpu.memory_space<vmem>>, %arg11: memref<1x32xf32, #tpu.memory_space<vmem>>, %arg12: memref<32x16xf32, #tpu.memory_space<vmem>>, %arg13: memref<1x16xf32, #tpu.memory_space<vmem>>, %arg14: memref<64x32xf32, #tpu.memory_space<vmem>>, %arg15: memref<1x32xf32, #tpu.memory_space<vmem>>, %arg16: memref<32x1xf32, #tpu.memory_space<vmem>>, %arg17: memref<1x1xf32, #tpu.memory_space<vmem>>, %arg18: memref<4x1xf32, #tpu.memory_space<vmem>>) attributes {dimension_semantics = [], scalar_prefetch = 0 : i64, scratch_operands = 0 : i64, tpu.core_type = #tpu.core_type<tc>} {
    %c0 = arith.constant 0 : index
    %c0_0 = arith.constant 0 : index
    %0 = vector.load %arg0[%c0, %c0_0] : memref<4x16xf32, #tpu.memory_space<vmem>>, vector<4x16xf32>
    %c0_1 = arith.constant 0 : index
    %c0_2 = arith.constant 0 : index
    %1 = vector.load %arg1[%c0_1, %c0_2] : memref<16x32xf32, #tpu.memory_space<vmem>>, vector<16x32xf32>
    %cst = arith.constant dense<0.000000e+00> : vector<4x32xf32>
    %2 = tpu.matmul %0, %1, %cst {dimension_numbers = #tpu.dot_dimension_numbers<[1], [0], [0], [1], [0, 0, 1, 1], [], []>} : vector<4x16xf32>, vector<16x32xf32>, vector<4x32xf32> -> vector<4x32xf32>
    %c0_3 = arith.constant 0 : index
    %c0_4 = arith.constant 0 : index
    %3 = vector.load %arg2[%c0_3, %c0_4] : memref<1x32xf32, #tpu.memory_space<vmem>>, vector<1x32xf32>
    %4 = vector.broadcast %3 : vector<1x32xf32> to vector<4x32xf32>
    %5 = arith.addf %2, %4 : vector<4x32xf32>
    %cst_5 = arith.constant 0.000000e+00 : f32
    %6 = vector.broadcast %cst_5 : f32 to vector<4x32xf32>
    %7 = arith.maximumf %5, %6 : vector<4x32xf32>
    %c0_6 = arith.constant 0 : index
    %c0_7 = arith.constant 0 : index
    %8 = vector.load %arg3[%c0_6, %c0_7] : memref<32x16xf32, #tpu.memory_space<vmem>>, vector<32x16xf32>
    %cst_8 = arith.constant dense<0.000000e+00> : vector<4x16xf32>
    %9 = tpu.matmul %7, %8, %cst_8 {dimension_numbers = #tpu.dot_dimension_numbers<[1], [0], [0], [1], [0, 0, 1, 1], [], []>} : vector<4x32xf32>, vector<32x16xf32>, vector<4x16xf32> -> vector<4x16xf32>
    %c0_9 = arith.constant 0 : index
    %c0_10 = arith.constant 0 : index
    %10 = vector.load %arg4[%c0_9, %c0_10] : memref<1x16xf32, #tpu.memory_space<vmem>>, vector<1x16xf32>
    %11 = vector.broadcast %10 : vector<1x16xf32> to vector<4x16xf32>
    %12 = arith.addf %9, %11 : vector<4x16xf32>
    %cst_11 = arith.constant 0.000000e+00 : f32
    %13 = vector.broadcast %cst_11 : f32 to vector<4x16xf32>
    %14 = arith.maximumf %12, %13 : vector<4x16xf32>
    %c0_12 = arith.constant 0 : index
    %c0_13 = arith.constant 0 : index
    %c0_14 = arith.constant 0 : index
    %15 = vector.load %arg5[%c0_12, %c0_13, %c0_14] : memref<2x4x8xi32, #tpu.memory_space<vmem>>, vector<1x4x8xi32>
    %16 = vector.shape_cast %15 : vector<1x4x8xi32> to vector<4x8xi32>
    %c0_15 = arith.constant 0 : index
    %c0_16 = arith.constant 0 : index
    %c0_17 = arith.constant 0 : index
    %17 = vector.load %arg6[%c0_15, %c0_16, %c0_17] : memref<2x64x16xf32, #tpu.memory_space<vmem>>, vector<1x64x16xf32>
    %18 = vector.shape_cast %17 : vector<1x64x16xf32> to vector<64x16xf32>
    %19 = tpu.iota {dimensions = array<i32: 1>} : vector<4x64xi32>
    %cst_18 = arith.constant 0.000000e+00 : f32
    %20 = vector.broadcast %cst_18 : f32 to vector<4x64xf32>
    %21 = vector.extract_strided_slice %16 {offsets = [0, 0], sizes = [4, 1], strides = [1, 1]} : vector<4x8xi32> to vector<4x1xi32>
    %22 = vector.broadcast %21 : vector<4x1xi32> to vector<4x64xi32>
    %23 = arith.cmpi eq, %22, %19 : vector<4x64xi32>
    %24 = arith.extui %23 : vector<4x64xi1> to vector<4x64xi32>
    %25 = arith.sitofp %24 : vector<4x64xi32> to vector<4x64xf32>
    %26 = arith.addf %20, %25 : vector<4x64xf32>
    %27 = vector.extract_strided_slice %16 {offsets = [0, 1], sizes = [4, 1], strides = [1, 1]} : vector<4x8xi32> to vector<4x1xi32>
    %28 = vector.broadcast %27 : vector<4x1xi32> to vector<4x64xi32>
    %29 = arith.cmpi eq, %28, %19 : vector<4x64xi32>
    %30 = arith.extui %29 : vector<4x64xi1> to vector<4x64xi32>
    %31 = arith.sitofp %30 : vector<4x64xi32> to vector<4x64xf32>
    %32 = arith.addf %26, %31 : vector<4x64xf32>
    %33 = vector.extract_strided_slice %16 {offsets = [0, 2], sizes = [4, 1], strides = [1, 1]} : vector<4x8xi32> to vector<4x1xi32>
    %34 = vector.broadcast %33 : vector<4x1xi32> to vector<4x64xi32>
    %35 = arith.cmpi eq, %34, %19 : vector<4x64xi32>
    %36 = arith.extui %35 : vector<4x64xi1> to vector<4x64xi32>
    %37 = arith.sitofp %36 : vector<4x64xi32> to vector<4x64xf32>
    %38 = arith.addf %32, %37 : vector<4x64xf32>
    %39 = vector.extract_strided_slice %16 {offsets = [0, 3], sizes = [4, 1], strides = [1, 1]} : vector<4x8xi32> to vector<4x1xi32>
    %40 = vector.broadcast %39 : vector<4x1xi32> to vector<4x64xi32>
    %41 = arith.cmpi eq, %40, %19 : vector<4x64xi32>
    %42 = arith.extui %41 : vector<4x64xi1> to vector<4x64xi32>
    %43 = arith.sitofp %42 : vector<4x64xi32> to vector<4x64xf32>
    %44 = arith.addf %38, %43 : vector<4x64xf32>
    %45 = vector.extract_strided_slice %16 {offsets = [0, 4], sizes = [4, 1], strides = [1, 1]} : vector<4x8xi32> to vector<4x1xi32>
    %46 = vector.broadcast %45 : vector<4x1xi32> to vector<4x64xi32>
    %47 = arith.cmpi eq, %46, %19 : vector<4x64xi32>
    %48 = arith.extui %47 : vector<4x64xi1> to vector<4x64xi32>
    %49 = arith.sitofp %48 : vector<4x64xi32> to vector<4x64xf32>
    %50 = arith.addf %44, %49 : vector<4x64xf32>
    %51 = vector.extract_strided_slice %16 {offsets = [0, 5], sizes = [4, 1], strides = [1, 1]} : vector<4x8xi32> to vector<4x1xi32>
    %52 = vector.broadcast %51 : vector<4x1xi32> to vector<4x64xi32>
    %53 = arith.cmpi eq, %52, %19 : vector<4x64xi32>
    %54 = arith.extui %53 : vector<4x64xi1> to vector<4x64xi32>
    %55 = arith.sitofp %54 : vector<4x64xi32> to vector<4x64xf32>
    %56 = arith.addf %50, %55 : vector<4x64xf32>
    %57 = vector.extract_strided_slice %16 {offsets = [0, 6], sizes = [4, 1], strides = [1, 1]} : vector<4x8xi32> to vector<4x1xi32>
    %58 = vector.broadcast %57 : vector<4x1xi32> to vector<4x64xi32>
    %59 = arith.cmpi eq, %58, %19 : vector<4x64xi32>
    %60 = arith.extui %59 : vector<4x64xi1> to vector<4x64xi32>
    %61 = arith.sitofp %60 : vector<4x64xi32> to vector<4x64xf32>
    %62 = arith.addf %56, %61 : vector<4x64xf32>
    %63 = vector.extract_strided_slice %16 {offsets = [0, 7], sizes = [4, 1], strides = [1, 1]} : vector<4x8xi32> to vector<4x1xi32>
    %64 = vector.broadcast %63 : vector<4x1xi32> to vector<4x64xi32>
    %65 = arith.cmpi eq, %64, %19 : vector<4x64xi32>
    %66 = arith.extui %65 : vector<4x64xi1> to vector<4x64xi32>
    %67 = arith.sitofp %66 : vector<4x64xi32> to vector<4x64xf32>
    %68 = arith.addf %62, %67 : vector<4x64xf32>
    %cst_19 = arith.constant dense<0.000000e+00> : vector<4x16xf32>
    %69 = tpu.matmul %68, %18, %cst_19 {dimension_numbers = #tpu.dot_dimension_numbers<[1], [0], [0], [1], [0, 0, 1, 1], [], []>} : vector<4x64xf32>, vector<64x16xf32>, vector<4x16xf32> -> vector<4x16xf32>
    %c1 = arith.constant 1 : index
    %c0_20 = arith.constant 0 : index
    %c0_21 = arith.constant 0 : index
    %70 = vector.load %arg5[%c1, %c0_20, %c0_21] : memref<2x4x8xi32, #tpu.memory_space<vmem>>, vector<1x4x8xi32>
    %71 = vector.shape_cast %70 : vector<1x4x8xi32> to vector<4x8xi32>
    %c1_22 = arith.constant 1 : index
    %c0_23 = arith.constant 0 : index
    %c0_24 = arith.constant 0 : index
    %72 = vector.load %arg6[%c1_22, %c0_23, %c0_24] : memref<2x64x16xf32, #tpu.memory_space<vmem>>, vector<1x64x16xf32>
    %73 = vector.shape_cast %72 : vector<1x64x16xf32> to vector<64x16xf32>
    %74 = tpu.iota {dimensions = array<i32: 1>} : vector<4x64xi32>
    %cst_25 = arith.constant 0.000000e+00 : f32
    %75 = vector.broadcast %cst_25 : f32 to vector<4x64xf32>
    %76 = vector.extract_strided_slice %71 {offsets = [0, 0], sizes = [4, 1], strides = [1, 1]} : vector<4x8xi32> to vector<4x1xi32>
    %77 = vector.broadcast %76 : vector<4x1xi32> to vector<4x64xi32>
    %78 = arith.cmpi eq, %77, %74 : vector<4x64xi32>
    %79 = arith.extui %78 : vector<4x64xi1> to vector<4x64xi32>
    %80 = arith.sitofp %79 : vector<4x64xi32> to vector<4x64xf32>
    %81 = arith.addf %75, %80 : vector<4x64xf32>
    %82 = vector.extract_strided_slice %71 {offsets = [0, 1], sizes = [4, 1], strides = [1, 1]} : vector<4x8xi32> to vector<4x1xi32>
    %83 = vector.broadcast %82 : vector<4x1xi32> to vector<4x64xi32>
    %84 = arith.cmpi eq, %83, %74 : vector<4x64xi32>
    %85 = arith.extui %84 : vector<4x64xi1> to vector<4x64xi32>
    %86 = arith.sitofp %85 : vector<4x64xi32> to vector<4x64xf32>
    %87 = arith.addf %81, %86 : vector<4x64xf32>
    %88 = vector.extract_strided_slice %71 {offsets = [0, 2], sizes = [4, 1], strides = [1, 1]} : vector<4x8xi32> to vector<4x1xi32>
    %89 = vector.broadcast %88 : vector<4x1xi32> to vector<4x64xi32>
    %90 = arith.cmpi eq, %89, %74 : vector<4x64xi32>
    %91 = arith.extui %90 : vector<4x64xi1> to vector<4x64xi32>
    %92 = arith.sitofp %91 : vector<4x64xi32> to vector<4x64xf32>
    %93 = arith.addf %87, %92 : vector<4x64xf32>
    %94 = vector.extract_strided_slice %71 {offsets = [0, 3], sizes = [4, 1], strides = [1, 1]} : vector<4x8xi32> to vector<4x1xi32>
    %95 = vector.broadcast %94 : vector<4x1xi32> to vector<4x64xi32>
    %96 = arith.cmpi eq, %95, %74 : vector<4x64xi32>
    %97 = arith.extui %96 : vector<4x64xi1> to vector<4x64xi32>
    %98 = arith.sitofp %97 : vector<4x64xi32> to vector<4x64xf32>
    %99 = arith.addf %93, %98 : vector<4x64xf32>
    %100 = vector.extract_strided_slice %71 {offsets = [0, 4], sizes = [4, 1], strides = [1, 1]} : vector<4x8xi32> to vector<4x1xi32>
    %101 = vector.broadcast %100 : vector<4x1xi32> to vector<4x64xi32>
    %102 = arith.cmpi eq, %101, %74 : vector<4x64xi32>
    %103 = arith.extui %102 : vector<4x64xi1> to vector<4x64xi32>
    %104 = arith.sitofp %103 : vector<4x64xi32> to vector<4x64xf32>
    %105 = arith.addf %99, %104 : vector<4x64xf32>
    %106 = vector.extract_strided_slice %71 {offsets = [0, 5], sizes = [4, 1], strides = [1, 1]} : vector<4x8xi32> to vector<4x1xi32>
    %107 = vector.broadcast %106 : vector<4x1xi32> to vector<4x64xi32>
    %108 = arith.cmpi eq, %107, %74 : vector<4x64xi32>
    %109 = arith.extui %108 : vector<4x64xi1> to vector<4x64xi32>
    %110 = arith.sitofp %109 : vector<4x64xi32> to vector<4x64xf32>
    %111 = arith.addf %105, %110 : vector<4x64xf32>
    %112 = vector.extract_strided_slice %71 {offsets = [0, 6], sizes = [4, 1], strides = [1, 1]} : vector<4x8xi32> to vector<4x1xi32>
    %113 = vector.broadcast %112 : vector<4x1xi32> to vector<4x64xi32>
    %114 = arith.cmpi eq, %113, %74 : vector<4x64xi32>
    %115 = arith.extui %114 : vector<4x64xi1> to vector<4x64xi32>
    %116 = arith.sitofp %115 : vector<4x64xi32> to vector<4x64xf32>
    %117 = arith.addf %111, %116 : vector<4x64xf32>
    %118 = vector.extract_strided_slice %71 {offsets = [0, 7], sizes = [4, 1], strides = [1, 1]} : vector<4x8xi32> to vector<4x1xi32>
    %119 = vector.broadcast %118 : vector<4x1xi32> to vector<4x64xi32>
    %120 = arith.cmpi eq, %119, %74 : vector<4x64xi32>
    %121 = arith.extui %120 : vector<4x64xi1> to vector<4x64xi32>
    %122 = arith.sitofp %121 : vector<4x64xi32> to vector<4x64xf32>
    %123 = arith.addf %117, %122 : vector<4x64xf32>
    %cst_26 = arith.constant dense<0.000000e+00> : vector<4x16xf32>
    %124 = tpu.matmul %123, %73, %cst_26 {dimension_numbers = #tpu.dot_dimension_numbers<[1], [0], [0], [1], [0, 0, 1, 1], [], []>} : vector<4x64xf32>, vector<64x16xf32>, vector<4x16xf32> -> vector<4x16xf32>
    %c0_27 = arith.constant 0 : index
    %c0_28 = arith.constant 0 : index
    %125 = vector.load %arg7[%c0_27, %c0_28] : memref<32x1xi32, #tpu.memory_space<vmem>>, vector<32x1xi32>
    %c0_29 = arith.constant 0 : index
    %c0_30 = arith.constant 0 : index
    %126 = vector.load %arg8[%c0_29, %c0_30] : memref<1x16xi32, #tpu.memory_space<vmem>>, vector<1x16xi32>
    %127 = vector.broadcast %125 : vector<32x1xi32> to vector<32x16xi32>
    %128 = vector.broadcast %126 : vector<1x16xi32> to vector<32x16xi32>
    %129 = arith.muli %127, %128 : vector<32x16xi32>
    %c0_31 = arith.constant 0 : index
    %c0_32 = arith.constant 0 : index
    %130 = vector.load %arg9[%c0_31, %c0_32] : memref<1x16xi32, #tpu.memory_space<vmem>>, vector<1x16xi32>
    %131 = vector.broadcast %130 : vector<1x16xi32> to vector<32x16xi32>
    %132 = arith.addi %129, %131 : vector<32x16xi32>
    %c1023_i32 = arith.constant 1023 : i32
    %133 = vector.broadcast %c1023_i32 : i32 to vector<32x16xi32>
    %134 = arith.andi %132, %133 : vector<32x16xi32>
    %135 = arith.sitofp %134 : vector<32x16xi32> to vector<32x16xf32>
    %cst_33 = arith.constant 0.00195503421 : f32
    %136 = vector.broadcast %cst_33 : f32 to vector<32x16xf32>
    %137 = arith.mulf %135, %136 : vector<32x16xf32>
    %cst_34 = arith.constant 1.000000e+00 : f32
    %138 = vector.broadcast %cst_34 : f32 to vector<32x16xf32>
    %139 = arith.subf %137, %138 : vector<32x16xf32>
    %c0_35 = arith.constant 0 : index
    %c0_36 = arith.constant 0 : index
    %140 = vector.load %arg10[%c0_35, %c0_36] : memref<16x32xf32, #tpu.memory_space<vmem>>, vector<16x32xf32>
    %cst_37 = arith.constant dense<0.000000e+00> : vector<32x32xf32>
    %141 = tpu.matmul %139, %140, %cst_37 {dimension_numbers = #tpu.dot_dimension_numbers<[1], [0], [0], [1], [0, 0, 1, 1], [], []>} : vector<32x16xf32>, vector<16x32xf32>, vector<32x32xf32> -> vector<32x32xf32>
    %c0_38 = arith.constant 0 : index
    %c0_39 = arith.constant 0 : index
    %142 = vector.load %arg11[%c0_38, %c0_39] : memref<1x32xf32, #tpu.memory_space<vmem>>, vector<1x32xf32>
    %143 = vector.broadcast %142 : vector<1x32xf32> to vector<32x32xf32>
    %144 = arith.addf %141, %143 : vector<32x32xf32>
    %cst_40 = arith.constant 0.000000e+00 : f32
    %145 = vector.broadcast %cst_40 : f32 to vector<32x32xf32>
    %146 = arith.maximumf %144, %145 : vector<32x32xf32>
    %c0_41 = arith.constant 0 : index
    %c0_42 = arith.constant 0 : index
    %147 = vector.load %arg12[%c0_41, %c0_42] : memref<32x16xf32, #tpu.memory_space<vmem>>, vector<32x16xf32>
    %cst_43 = arith.constant dense<0.000000e+00> : vector<32x16xf32>
    %148 = tpu.matmul %146, %147, %cst_43 {dimension_numbers = #tpu.dot_dimension_numbers<[1], [0], [0], [1], [0, 0, 1, 1], [], []>} : vector<32x32xf32>, vector<32x16xf32>, vector<32x16xf32> -> vector<32x16xf32>
    %c0_44 = arith.constant 0 : index
    %c0_45 = arith.constant 0 : index
    %149 = vector.load %arg13[%c0_44, %c0_45] : memref<1x16xf32, #tpu.memory_space<vmem>>, vector<1x16xf32>
    %150 = vector.broadcast %149 : vector<1x16xf32> to vector<32x16xf32>
    %151 = arith.addf %148, %150 : vector<32x16xf32>
    %152 = tpu.iota {dimensions = array<i32: 0>} : vector<4x32xi32>
    %153 = tpu.iota {dimensions = array<i32: 1>} : vector<4x32xi32>
    %c8_i32 = arith.constant 8 : i32
    %154 = vector.broadcast %c8_i32 : i32 to vector<4x32xi32>
    %155 = arith.muli %152, %154 : vector<4x32xi32>
    %156 = arith.cmpi sge, %153, %155 : vector<4x32xi32>
    %c8_i32_46 = arith.constant 8 : i32
    %157 = vector.broadcast %c8_i32_46 : i32 to vector<4x32xi32>
    %158 = arith.addi %155, %157 : vector<4x32xi32>
    %159 = arith.cmpi slt, %153, %158 : vector<4x32xi32>
    %160 = arith.andi %156, %159 : vector<4x32xi1>
    %161 = arith.extui %160 : vector<4x32xi1> to vector<4x32xi32>
    %162 = arith.sitofp %161 : vector<4x32xi32> to vector<4x32xf32>
    %cst_47 = arith.constant dense<0.000000e+00> : vector<4x16xf32>
    %163 = tpu.matmul %162, %151, %cst_47 {dimension_numbers = #tpu.dot_dimension_numbers<[1], [0], [0], [1], [0, 0, 1, 1], [], []>} : vector<4x32xf32>, vector<32x16xf32>, vector<4x16xf32> -> vector<4x16xf32>
    %c0_48 = arith.constant 0 : index
    %c0_49 = arith.constant 0 : index
    %164 = vector.load %arg15[%c0_48, %c0_49] : memref<1x32xf32, #tpu.memory_space<vmem>>, vector<1x32xf32>
    %c0_50 = arith.constant 0 : index
    %c0_51 = arith.constant 0 : index
    %165 = vector.load %arg14[%c0_50, %c0_51] : memref<64x32xf32, #tpu.memory_space<vmem>>, vector<16x32xf32>
    %cst_52 = arith.constant dense<0.000000e+00> : vector<4x32xf32>
    %166 = tpu.matmul %14, %165, %cst_52 {dimension_numbers = #tpu.dot_dimension_numbers<[1], [0], [0], [1], [0, 0, 1, 1], [], []>} : vector<4x16xf32>, vector<16x32xf32>, vector<4x32xf32> -> vector<4x32xf32>
    %167 = vector.broadcast %164 : vector<1x32xf32> to vector<4x32xf32>
    %168 = arith.addf %167, %166 : vector<4x32xf32>
    %c16 = arith.constant 16 : index
    %c0_53 = arith.constant 0 : index
    %169 = vector.load %arg14[%c16, %c0_53] : memref<64x32xf32, #tpu.memory_space<vmem>>, vector<16x32xf32>
    %cst_54 = arith.constant dense<0.000000e+00> : vector<4x32xf32>
    %170 = tpu.matmul %69, %169, %cst_54 {dimension_numbers = #tpu.dot_dimension_numbers<[1], [0], [0], [1], [0, 0, 1, 1], [], []>} : vector<4x16xf32>, vector<16x32xf32>, vector<4x32xf32> -> vector<4x32xf32>
    %171 = arith.addf %168, %170 : vector<4x32xf32>
    %c32 = arith.constant 32 : index
    %c0_55 = arith.constant 0 : index
    %172 = vector.load %arg14[%c32, %c0_55] : memref<64x32xf32, #tpu.memory_space<vmem>>, vector<16x32xf32>
    %cst_56 = arith.constant dense<0.000000e+00> : vector<4x32xf32>
    %173 = tpu.matmul %124, %172, %cst_56 {dimension_numbers = #tpu.dot_dimension_numbers<[1], [0], [0], [1], [0, 0, 1, 1], [], []>} : vector<4x16xf32>, vector<16x32xf32>, vector<4x32xf32> -> vector<4x32xf32>
    %174 = arith.addf %171, %173 : vector<4x32xf32>
    %c48 = arith.constant 48 : index
    %c0_57 = arith.constant 0 : index
    %175 = vector.load %arg14[%c48, %c0_57] : memref<64x32xf32, #tpu.memory_space<vmem>>, vector<16x32xf32>
    %cst_58 = arith.constant dense<0.000000e+00> : vector<4x32xf32>
    %176 = tpu.matmul %163, %175, %cst_58 {dimension_numbers = #tpu.dot_dimension_numbers<[1], [0], [0], [1], [0, 0, 1, 1], [], []>} : vector<4x16xf32>, vector<16x32xf32>, vector<4x32xf32> -> vector<4x32xf32>
    %177 = arith.addf %174, %176 : vector<4x32xf32>
    %cst_59 = arith.constant 0.000000e+00 : f32
    %178 = vector.broadcast %cst_59 : f32 to vector<4x32xf32>
    %179 = arith.maximumf %177, %178 : vector<4x32xf32>
    %c0_60 = arith.constant 0 : index
    %c0_61 = arith.constant 0 : index
    %180 = vector.load %arg16[%c0_60, %c0_61] : memref<32x1xf32, #tpu.memory_space<vmem>>, vector<32x1xf32>
    %cst_62 = arith.constant dense<0.000000e+00> : vector<4x1xf32>
    %181 = tpu.matmul %179, %180, %cst_62 {dimension_numbers = #tpu.dot_dimension_numbers<[1], [0], [0], [1], [0, 0, 1, 1], [], []>} : vector<4x32xf32>, vector<32x1xf32>, vector<4x1xf32> -> vector<4x1xf32>
    %c0_63 = arith.constant 0 : index
    %c0_64 = arith.constant 0 : index
    %182 = vector.load %arg17[%c0_63, %c0_64] : memref<1x1xf32, #tpu.memory_space<vmem>>, vector<1x1xf32>
    %183 = vector.broadcast %182 : vector<1x1xf32> to vector<4x1xf32>
    %184 = arith.addf %181, %183 : vector<4x1xf32>
    %185 = arith.negf %184 : vector<4x1xf32>
    %186 = math.exp %185 : vector<4x1xf32>
    %cst_65 = arith.constant 1.000000e+00 : f32
    %187 = vector.broadcast %cst_65 : f32 to vector<4x1xf32>
    %188 = arith.addf %187, %186 : vector<4x1xf32>
    %189 = arith.divf %187, %188 : vector<4x1xf32>
    %c0_66 = arith.constant 0 : index
    %c0_67 = arith.constant 0 : index
    %190 = vector.load %arg18[%c0_66, %c0_67] : memref<4x1xf32, #tpu.memory_space<vmem>>, vector<4x1xf32>
    tpu.vector_store %arg18[%c0_66, %c0_67], %189 {strides = array<i32>} : memref<4x1xf32, #tpu.memory_space<vmem>>, vector<4x1xf32>,
    return
  }
}

</mosaic_0001>

<llo_original>
// kernel: tpu_custom_call.1
$region0: #{tpu_custom_call.1}
  #allocation0 [shape = 'u32[]', space=smem, size = 0x4, offset = 0x4, fixed_abs, tag = 'smem constant byte address 0x4 - core index']
  #allocation1 [shape = 'u32[144,128]{1,0:T(1,128)}', space=vmem, size = 0x12000, scoped, tag = 'internal scratch']
  #allocation2 [shape = 'f32[1,1]{1,0:T(1,128)S(1)}', space=vmem, size = 0x200, scoped, tag = 'scoped memory for tpu_custom_call.1']
  %s0 = inlined_call_operand.hbm [shape: f32[4,16], index: 0, kind: input, shape index: {}]
  %s1 = inlined_call_operand.hbm [shape: f32[16,32], index: 1, kind: input, shape index: {}]
  %s2 = inlined_call_operand.hbm [shape: f32[1,32], index: 2, kind: input, shape index: {}]
  %s3 = inlined_call_operand.hbm [shape: f32[32,16], index: 3, kind: input, shape index: {}]
  %s4 = inlined_call_operand.hbm [shape: f32[1,16], index: 4, kind: input, shape index: {}]
  %s5 = inlined_call_operand.hbm [shape: s32[2,4,8], index: 5, kind: input, shape index: {}]
  %s6 = inlined_call_operand.hbm [shape: f32[2,64,16], index: 6, kind: input, shape index: {}]
  %s7 = inlined_call_operand.hbm [shape: s32[32,1], index: 7, kind: input, shape index: {}]
  %s8 = inlined_call_operand.hbm [shape: s32[1,16], index: 8, kind: input, shape index: {}]
  %s9 = inlined_call_operand.hbm [shape: s32[1,16], index: 9, kind: input, shape index: {}]
  %s10 = inlined_call_operand.hbm [shape: f32[16,32], index: 10, kind: input, shape index: {}]
  %s11 = inlined_call_operand.hbm [shape: f32[1,32], index: 11, kind: input, shape index: {}]
  %s12 = inlined_call_operand.hbm [shape: f32[32,16], index: 12, kind: input, shape index: {}]
  %s13 = inlined_call_operand.hbm [shape: f32[1,16], index: 13, kind: input, shape index: {}]
  %s14 = inlined_call_operand.hbm [shape: f32[64,32], index: 14, kind: input, shape index: {}]
  %s15 = inlined_call_operand.hbm [shape: f32[1,32], index: 15, kind: input, shape index: {}]
  %s16 = inlined_call_operand.hbm [shape: f32[32,1], index: 16, kind: input, shape index: {}]
  %s17 = inlined_call_operand.<no memory space> [shape: f32[1,1], index: 17, kind: input, shape index: {}]
  %s18 = inlined_call_operand.hbm [shape: f32[4,1], index: 18, kind: output, shape index: {}]
  %s19 = sld [smem:[#allocation0]]
  $region150: #{tpu_custom_call.1} parent=0
    _
  %s21 = ssub.s32 1, %s19
  %s22 = scalar_select 0, %s21, %s19
  %v23 = vstv %s17
  %24 = vst [vmem:[#allocation2] sm:$0x1] %v23
  $region1: #{tpu_custom_call.1} parent=0
    #allocation3 [shape = 'u8[2048]{0}', space=vmem, size = 0x800, scoped, tag = 'input window, operand 0, single buffered']
    #allocation4 [shape = 's32[1]{0}', space=sflag, size = 0x4, scoped, tag = 'scoped memory for tpu_custom_call.1']
    #allocation5 [shape = 's32[1]{0}', space=sflag, size = 0x4, scoped, tag = 'scoped memory for tpu_custom_call.1']
    #allocation6 [shape = 'u8[8192]{0}', space=vmem, size = 0x2000, scoped, tag = 'input window, operand 1, single buffered']
    #allocation7 [shape = 's32[1]{0}', space=sflag, size = 0x4, scoped, tag = 'scoped memory for tpu_custom_call.1']
    #allocation8 [shape = 'u8[512]{0}', space=vmem, size = 0x400, scoped, tag = 'input window, operand 2, single buffered']
    #allocation9 [shape = 'u8[16384]{0}', space=vmem, size = 0x4000, scoped, tag = 'input window, operand 3, single buffered']
    #allocation10 [shape = 's32[1]{0}', space=sflag, size = 0x4, scoped, tag = 'scoped memory for tpu_custom_call.1']
    #allocation11 [shape = 'u8[512]{0}', space=vmem, size = 0x400, scoped, tag = 'input window, operand 4, single buffered']
    #allocation12 [shape = 'u8[4096]{0}', space=vmem, size = 0x1000, scoped, tag = 'input window, operand 5, single buffered']
    #allocation13 [shape = 's32[1]{0}', space=sflag, size = 0x4, scoped, tag = 'scoped memory for tpu_custom_call.1']
    #allocation14 [shape = 'u8[65536]{0}', space=vmem, size = 0x10000, scoped, tag = 'input window, operand 6, single buffered']
    #allocation15 [shape = 'u8[16384]{0}', space=vmem, size = 0x4000, scoped, tag = 'input window, operand 7, single buffered']
    #allocation16 [shape = 's32[1]{0}', space=sflag, size = 0x4, scoped, tag = 'scoped memory for tpu_custom_call.1']
    #allocation17 [shape = 'u8[512]{0}', space=vmem, size = 0x400, scoped, tag = 'input window, operand 8, single buffered']
    #allocation18 [shape = 'u8[512]{0}', space=vmem, size = 0x400, scoped, tag = 'input window, operand 9, single buffered']
    #allocation19 [shape = 's32[1]{0}', space=sflag, size = 0x4, scoped, tag = 'scoped memory for tpu_custom_call.1']
    #allocation20 [shape = 'u8[8192]{0}', space=vmem, size = 0x2000, scoped, tag = 'input window, operand 10, single buffered']
    #allocation21 [shape = 'u8[512]{0}', space=vmem, size = 0x400, scoped, tag = 'input window, operand 11, single buffered']
    #allocation22 [shape = 's32[1]{0}', space=sflag, size = 0x4, scoped, tag = 'scoped memory for tpu_custom_call.1']
    #allocation23 [shape = 'u8[16384]{0}', space=vmem, size = 0x4000, scoped, tag = 'input window, operand 12, single buffered']
    #allocation24 [shape = 'u8[512]{0}', space=vmem, size = 0x400, scoped, tag = 'input window, operand 13, single buffered']
    #allocation25 [shape = 's32[1]{0}', space=sflag, size = 0x4, scoped, tag = 'scoped memory for tpu_custom_call.1']
    #allocation26 [shape = 'u8[32768]{0}', space=vmem, size = 0x8000, scoped, tag = 'input window, operand 14, single buffered']
    #allocation27 [shape = 'u8[512]{0}', space=vmem, size = 0x400, scoped, tag = 'input window, operand 15, single buffered']
    #allocation28 [shape = 's32[1]{0}', space=sflag, size = 0x4, scoped, tag = 'scoped memory for tpu_custom_call.1']
    #allocation29 [shape = 'u8[16384]{0}', space=vmem, size = 0x4000, scoped, tag = 'input window, operand 16, single buffered']
    #allocation30 [shape = 'u8[2048]{0}', space=vmem, size = 0x800, scoped, tag = 'output window, operand 0, single buffered']
    %25 = vsyncpa [#allocation4], 0
    %26 = vsyncpa [#allocation7], 0
    %27 = vsyncpa [#allocation10], 0
    %28 = vsyncpa [#allocation13], 0
    %29 = vsyncpa [#allocation16], 0
    %30 = vsyncpa [#allocation19], 0
    %31 = vsyncpa [#allocation22], 0
    %32 = vsyncpa [#allocation25], 0
    %33 = vsyncpa [#allocation28], 0
    %34 = vsyncpa [#allocation5], 0
    // Predicated region
    $region2: #{tpu_custom_call.1} parent=1 // pred_check
      _
    $region3: #{tpu_custom_call.1} parent=1 // pred_check_branch
      %36 = sbr.rel (0) target = $region5
    $region4: #{tpu_custom_call.1} parent=1 // pred_region
      %s38 = ssub.s32 64, 64
      %39 = vsyncadd [#allocation4], %s38
      %s41 = sshll.u32 [#allocation3], 4
      %s42 = int_to_ptr.vmem [resolvable:$true] %s41
      %44 = dma.hbm_to_vmem [thread:$0]  %s0, 64, %s42, [#allocation4]
    $region5: #{tpu_custom_call.1} parent=1 // pred_fallthru
      _
    // Predicated region
    $region6: #{tpu_custom_call.1} parent=1 // pred_check
      _
    $region7: #{tpu_custom_call.1} parent=1 // pred_check_branch
      %46 = sbr.rel (0) target = $region9
    $region8: #{tpu_custom_call.1} parent=1 // pred_region
      %s48 = ssub.s32 256, 256
      %49 = vsyncadd [#allocation7], %s48
      %s50 = sshll.u32 [#allocation6], 4
      %s51 = int_to_ptr.vmem [resolvable:$true] %s50
      %56 = dma.hbm_to_vmem [thread:$0]  %s1, 256, %s51, [#allocation7], 128, 128, 8
    $region9: #{tpu_custom_call.1} parent=1 // pred_fallthru
      _
    // Predicated region
    $region10: #{tpu_custom_call.1} parent=1 // pred_check
      _
    $region11: #{tpu_custom_call.1} parent=1 // pred_check_branch
      %58 = sbr.rel (0) target = $region13
    $region12: #{tpu_custom_call.1} parent=1 // pred_region
      %s60 = ssub.s32 16, 16
      %61 = vsyncadd [#allocation7], %s60
      %s63 = sshll.u32 [#allocation8], 4
      %s64 = int_to_ptr.vmem [resolvable:$true] %s63
      %66 = dma.hbm_to_vmem [thread:$0]  %s2, 16, %s64, [#allocation7]
    $region13: #{tpu_custom_call.1} parent=1 // pred_fallthru
      _
    // Predicated region
    $region14: #{tpu_custom_call.1} parent=1 // pred_check
      _
    $region15: #{tpu_custom_call.1} parent=1 // pred_check_branch
      %68 = sbr.rel (0) target = $region17
    $region16: #{tpu_custom_call.1} parent=1 // pred_region
      %s70 = ssub.s32 512, 512
      %71 = vsyncadd [#allocation10], %s70
      %s72 = sshll.u32 [#allocation9], 4
      %s73 = int_to_ptr.vmem [resolvable:$true] %s72
      %78 = dma.hbm_to_vmem [thread:$0]  %s3, 512, %s73, [#allocation10], 128, 128, 8
    $region17: #{tpu_custom_call.1} parent=1 // pred_fallthru
      _
    // Predicated region
    $region18: #{tpu_custom_call.1} parent=1 // pred_check
      _
    $region19: #{tpu_custom_call.1} parent=1 // pred_check_branch
      %80 = sbr.rel (0) target = $region21
    $region20: #{tpu_custom_call.1} parent=1 // pred_region
      %s82 = ssub.s32 16, 16
      %83 = vsyncadd [#allocation10], %s82
      %s85 = sshll.u32 [#allocation11], 4
      %s86 = int_to_ptr.vmem [resolvable:$true] %s85
      %88 = dma.hbm_to_vmem [thread:$0]  %s4, 16, %s86, [#allocation10]
    $region21: #{tpu_custom_call.1} parent=1 // pred_fallthru
      _
    // Predicated region
    $region22: #{tpu_custom_call.1} parent=1 // pred_check
      _
    $region23: #{tpu_custom_call.1} parent=1 // pred_check_branch
      %90 = sbr.rel (0) target = $region25
    $region24: #{tpu_custom_call.1} parent=1 // pred_region
      %s92 = ssub.s32 128, 128
      %93 = vsyncadd [#allocation13], %s92
      %s94 = sshll.u32 [#allocation12], 4
      %s95 = int_to_ptr.vmem [resolvable:$true] %s94
      %100 = dma.hbm_to_vmem [thread:$0]  %s5, 128, %s95, [#allocation13], 64, 64, 4
    $region25: #{tpu_custom_call.1} parent=1 // pred_fallthru
      _
    // Predicated region
    $region26: #{tpu_custom_call.1} parent=1 // pred_check
      _
    $region27: #{tpu_custom_call.1} parent=1 // pred_check_branch
      %102 = sbr.rel (0) target = $region29
    $region28: #{tpu_custom_call.1} parent=1 // pred_region
      %s104 = ssub.s32 2048, 2048
      %105 = vsyncadd [#allocation13], %s104
      %s106 = sshll.u32 [#allocation14], 4
      %s107 = int_to_ptr.vmem [resolvable:$true] %s106
      %112 = dma.hbm_to_vmem [thread:$0]  %s6, 2048, %s107, [#allocation13], 128, 128, 8
    $region29: #{tpu_custom_call.1} parent=1 // pred_fallthru
      _
    // Predicated region
    $region30: #{tpu_custom_call.1} parent=1 // pred_check
      _
    $region31: #{tpu_custom_call.1} parent=1 // pred_check_branch
      %114 = sbr.rel (0) target = $region33
    $region32: #{tpu_custom_call.1} parent=1 // pred_region
      %s116 = ssub.s32 512, 512
      %117 = vsyncadd [#allocation16], %s116
      %s118 = sshll.u32 [#allocation15], 4
      %s119 = int_to_ptr.vmem [resolvable:$true] %s118
      %124 = dma.hbm_to_vmem [thread:$0]  %s7, 512, %s119, [#allocation16], 128, 128, 8
    $region33: #{tpu_custom_call.1} parent=1 // pred_fallthru
      _
    // Predicated region
    $region34: #{tpu_custom_call.1} parent=1 // pred_check
      _
    $region35: #{tpu_custom_call.1} parent=1 // pred_check_branch
      %126 = sbr.rel (0) target = $region37
    $region36: #{tpu_custom_call.1} parent=1 // pred_region
      %s128 = ssub.s32 16, 16
      %129 = vsyncadd [#allocation16], %s128
      %s131 = sshll.u32 [#allocation17], 4
      %s132 = int_to_ptr.vmem [resolvable:$true] %s131
      %134 = dma.hbm_to_vmem [thread:$0]  %s8, 16, %s132, [#allocation16]
    $region37: #{tpu_custom_call.1} parent=1 // pred_fallthru
      _
    // Predicated region
    $region38: #{tpu_custom_call.1} parent=1 // pred_check
      _
    $region39: #{tpu_custom_call.1} parent=1 // pred_check_branch
      %136 = sbr.rel (0) target = $region41
    $region40: #{tpu_custom_call.1} parent=1 // pred_region
      %s138 = ssub.s32 16, 16
      %139 = vsyncadd [#allocation19], %s138
      %s141 = sshll.u32 [#allocation18], 4
      %s142 = int_to_ptr.vmem [resolvable:$true] %s141
      %144 = dma.hbm_to_vmem [thread:$0]  %s9, 16, %s142, [#allocation19]
    $region41: #{tpu_custom_call.1} parent=1 // pred_fallthru
      _
    // Predicated region
    $region42: #{tpu_custom_call.1} parent=1 // pred_check
      _
    $region43: #{tpu_custom_call.1} parent=1 // pred_check_branch
      %146 = sbr.rel (0) target = $region45
    $region44: #{tpu_custom_call.1} parent=1 // pred_region
      %s148 = ssub.s32 256, 256
      %149 = vsyncadd [#allocation19], %s148
      %s150 = sshll.u32 [#allocation20], 4
      %s151 = int_to_ptr.vmem [resolvable:$true] %s150
      %156 = dma.hbm_to_vmem [thread:$0]  %s10, 256, %s151, [#allocation19], 128, 128, 8
    $region45: #{tpu_custom_call.1} parent=1 // pred_fallthru
      _
    // Predicated region
    $region46: #{tpu_custom_call.1} parent=1 // pred_check
      _
    $region47: #{tpu_custom_call.1} parent=1 // pred_check_branch
      %158 = sbr.rel (0) target = $region49
    $region48: #{tpu_custom_call.1} parent=1 // pred_region
      %s160 = ssub.s32 16, 16
      %161 = vsyncadd [#allocation22], %s160
      %s163 = sshll.u32 [#allocation21], 4
      %s164 = int_to_ptr.vmem [resolvable:$true] %s163
      %166 = dma.hbm_to_vmem [thread:$0]  %s11, 16, %s164, [#allocation22]
    $region49: #{tpu_custom_call.1} parent=1 // pred_fallthru
      _
    // Predicated region
    $region50: #{tpu_custom_call.1} parent=1 // pred_check
      _
    $region51: #{tpu_custom_call.1} parent=1 // pred_check_branch
      %168 = sbr.rel (0) target = $region53
    $region52: #{tpu_custom_call.1} parent=1 // pred_region
      %s170 = ssub.s32 512, 512
      %171 = vsyncadd [#allocation22], %s170
      %s172 = sshll.u32 [#allocation23], 4
      %s173 = int_to_ptr.vmem [resolvable:$true] %s172
      %178 = dma.hbm_to_vmem [thread:$0]  %s12, 512, %s173, [#allocation22], 128, 128, 8
    $region53: #{tpu_custom_call.1} parent=1 // pred_fallthru
      _
    // Predicated region
    $region54: #{tpu_custom_call.1} parent=1 // pred_check
      _
    $region55: #{tpu_custom_call.1} parent=1 // pred_check_branch
      %180 = sbr.rel (0) target = $region57
    $region56: #{tpu_custom_call.1} parent=1 // pred_region
      %s182 = ssub.s32 16, 16
      %183 = vsyncadd [#allocation25], %s182
      %s185 = sshll.u32 [#allocation24], 4
      %s186 = int_to_ptr.vmem [resolvable:$true] %s185
      %188 = dma.hbm_to_vmem [thread:$0]  %s13, 16, %s186, [#allocation25]
    $region57: #{tpu_custom_call.1} parent=1 // pred_fallthru
      _
    // Predicated region
    $region58: #{tpu_custom_call.1} parent=1 // pred_check
      _
    $region59: #{tpu_custom_call.1} parent=1 // pred_check_branch
      %190 = sbr.rel (0) target = $region61
    $region60: #{tpu_custom_call.1} parent=1 // pred_region
      %s192 = ssub.s32 1024, 1024
      %193 = vsyncadd [#allocation25], %s192
      %s194 = sshll.u32 [#allocation26], 4
      %s195 = int_to_ptr.vmem [resolvable:$true] %s194
      %200 = dma.hbm_to_vmem [thread:$0]  %s14, 1024, %s195, [#allocation25], 128, 128, 8
    $region61: #{tpu_custom_call.1} parent=1 // pred_fallthru
      _
    // Predicated region
    $region62: #{tpu_custom_call.1} parent=1 // pred_check
      _
    $region63: #{tpu_custom_call.1} parent=1 // pred_check_branch
      %202 = sbr.rel (0) target = $region65
    $region64: #{tpu_custom_call.1} parent=1 // pred_region
      %s204 = ssub.s32 16, 16
      %205 = vsyncadd [#allocation28], %s204
      %s207 = sshll.u32 [#allocation27], 4
      %s208 = int_to_ptr.vmem [resolvable:$true] %s207
      %210 = dma.hbm_to_vmem [thread:$0]  %s15, 16, %s208, [#allocation28]
    $region65: #{tpu_custom_call.1} parent=1 // pred_fallthru
      _
    // Predicated region
    $region66: #{tpu_custom_call.1} parent=1 // pred_check
      _
    $region67: #{tpu_custom_call.1} parent=1 // pred_check_branch
      %212 = sbr.rel (0) target = $region69
    $region68: #{tpu_custom_call.1} parent=1 // pred_region
      %s214 = ssub.s32 512, 512
      %215 = vsyncadd [#allocation28], %s214
      %s216 = sshll.u32 [#allocation29], 4
      %s217 = int_to_ptr.vmem [resolvable:$true] %s216
      %222 = dma.hbm_to_vmem [thread:$0]  %s16, 512, %s217, [#allocation28], 128, 128, 8
    $region69: #{tpu_custom_call.1} parent=1 // pred_fallthru
      _
    // Predicated region
    $region70: #{tpu_custom_call.1} parent=1 // pred_check
      _
    $region71: #{tpu_custom_call.1} parent=1 // pred_check_branch
      %224 = sbr.rel (0) target = $region73
    $region72: #{tpu_custom_call.1} parent=1 // pred_region
      _
    $region73: #{tpu_custom_call.1} parent=1 // pred_fallthru
      _
    // Predicated region
    $region74: #{tpu_custom_call.1} parent=1 // pred_check
      _
    $region75: #{tpu_custom_call.1} parent=1 // pred_check_branch
      %226 = sbr.rel (0) target = $region77
    $region76: #{tpu_custom_call.1} parent=1 // pred_region
      %227 = dma.done [#allocation4], 64
    $region77: #{tpu_custom_call.1} parent=1 // pred_fallthru
      _
    // Predicated region
    $region78: #{tpu_custom_call.1} parent=1 // pred_check
      _
    $region79: #{tpu_custom_call.1} parent=1 // pred_check_branch
      %229 = sbr.rel (0) target = $region81
    $region80: #{tpu_custom_call.1} parent=1 // pred_region
      %230 = dma.done [#allocation7], 256
    $region81: #{tpu_custom_call.1} parent=1 // pred_fallthru
      _
    // Predicated region
    $region82: #{tpu_custom_call.1} parent=1 // pred_check
      _
    $region83: #{tpu_custom_call.1} parent=1 // pred_check_branch
      %232 = sbr.rel (0) target = $region85
    $region84: #{tpu_custom_call.1} parent=1 // pred_region
      %233 = dma.done [#allocation7], 16
    $region85: #{tpu_custom_call.1} parent=1 // pred_fallthru
      _
    // Predicated region
    $region86: #{tpu_custom_call.1} parent=1 // pred_check
      _
    $region87: #{tpu_custom_call.1} parent=1 // pred_check_branch
      %235 = sbr.rel (0) target = $region89
    $region88: #{tpu_custom_call.1} parent=1 // pred_region
      %236 = dma.done [#allocation10], 512
    $region89: #{tpu_custom_call.1} parent=1 // pred_fallthru
      _
    // Predicated region
    $region90: #{tpu_custom_call.1} parent=1 // pred_check
      _
    $region91: #{tpu_custom_call.1} parent=1 // pred_check_branch
      %238 = sbr.rel (0) target = $region93
    $region92: #{tpu_custom_call.1} parent=1 // pred_region
      %239 = dma.done [#allocation10], 16
    $region93: #{tpu_custom_call.1} parent=1 // pred_fallthru
      _
    // Predicated region
    $region94: #{tpu_custom_call.1} parent=1 // pred_check
      _
    $region95: #{tpu_custom_call.1} parent=1 // pred_check_branch
      %241 = sbr.rel (0) target = $region97
    $region96: #{tpu_custom_call.1} parent=1 // pred_region
      %242 = dma.done [#allocation13], 128
    $region97: #{tpu_custom_call.1} parent=1 // pred_fallthru
      _
    // Predicated region
    $region98: #{tpu_custom_call.1} parent=1 // pred_check
      _
    $region99: #{tpu_custom_call.1} parent=1 // pred_check_branch
      %244 = sbr.rel (0) target = $region101
    $region100: #{tpu_custom_call.1} parent=1 // pred_region
      %245 = dma.done [#allocation13], 2048
    $region101: #{tpu_custom_call.1} parent=1 // pred_fallthru
      _
    // Predicated region
    $region102: #{tpu_custom_call.1} parent=1 // pred_check
      _
    $region103: #{tpu_custom_call.1} parent=1 // pred_check_branch
      %247 = sbr.rel (0) target = $region105
    $region104: #{tpu_custom_call.1} parent=1 // pred_region
      %248 = dma.done [#allocation16], 512
    $region105: #{tpu_custom_call.1} parent=1 // pred_fallthru
      _
    // Predicated region
    $region106: #{tpu_custom_call.1} parent=1 // pred_check
      _
    $region107: #{tpu_custom_call.1} parent=1 // pred_check_branch
      %250 = sbr.rel (0) target = $region109
    $region108: #{tpu_custom_call.1} parent=1 // pred_region
      %251 = dma.done [#allocation16], 16
    $region109: #{tpu_custom_call.1} parent=1 // pred_fallthru
      _
    // Predicated region
    $region110: #{tpu_custom_call.1} parent=1 // pred_check
      _
    $region111: #{tpu_custom_call.1} parent=1 // pred_check_branch
      %253 = sbr.rel (0) target = $region113
    $region112: #{tpu_custom_call.1} parent=1 // pred_region
      %254 = dma.done [#allocation19], 16
    $region113: #{tpu_custom_call.1} parent=1 // pred_fallthru
      _
    // Predicated region
    $region114: #{tpu_custom_call.1} parent=1 // pred_check
      _
    $region115: #{tpu_custom_call.1} parent=1 // pred_check_branch
      %256 = sbr.rel (0) target = $region117
    $region116: #{tpu_custom_call.1} parent=1 // pred_region
      %257 = dma.done [#allocation19], 256
    $region117: #{tpu_custom_call.1} parent=1 // pred_fallthru
      _
    // Predicated region
    $region118: #{tpu_custom_call.1} parent=1 // pred_check
      _
    $region119: #{tpu_custom_call.1} parent=1 // pred_check_branch
      %259 = sbr.rel (0) target = $region121
    $region120: #{tpu_custom_call.1} parent=1 // pred_region
      %260 = dma.done [#allocation22], 16
    $region121: #{tpu_custom_call.1} parent=1 // pred_fallthru
      _
    // Predicated region
    $region122: #{tpu_custom_call.1} parent=1 // pred_check
      _
    $region123: #{tpu_custom_call.1} parent=1 // pred_check_branch
      %262 = sbr.rel (0) target = $region125
    $region124: #{tpu_custom_call.1} parent=1 // pred_region
      %263 = dma.done [#allocation22], 512
    $region125: #{tpu_custom_call.1} parent=1 // pred_fallthru
      _
    // Predicated region
    $region126: #{tpu_custom_call.1} parent=1 // pred_check
      _
    $region127: #{tpu_custom_call.1} parent=1 // pred_check_branch
      %265 = sbr.rel (0) target = $region129
    $region128: #{tpu_custom_call.1} parent=1 // pred_region
      %266 = dma.done [#allocation25], 16
    $region129: #{tpu_custom_call.1} parent=1 // pred_fallthru
      _
    // Predicated region
    $region130: #{tpu_custom_call.1} parent=1 // pred_check
      _
    $region131: #{tpu_custom_call.1} parent=1 // pred_check_branch
      %268 = sbr.rel (0) target = $region133
    $region132: #{tpu_custom_call.1} parent=1 // pred_region
      %269 = dma.done [#allocation25], 1024
    $region133: #{tpu_custom_call.1} parent=1 // pred_fallthru
      _
    // Predicated region
    $region134: #{tpu_custom_call.1} parent=1 // pred_check
      _
    $region135: #{tpu_custom_call.1} parent=1 // pred_check_branch
      %271 = sbr.rel (0) target = $region137
    $region136: #{tpu_custom_call.1} parent=1 // pred_region
      %272 = dma.done [#allocation28], 16
    $region137: #{tpu_custom_call.1} parent=1 // pred_fallthru
      _
    // Predicated region
    $region138: #{tpu_custom_call.1} parent=1 // pred_check
      _
    $region139: #{tpu_custom_call.1} parent=1 // pred_check_branch
      %274 = sbr.rel (0) target = $region141
    $region140: #{tpu_custom_call.1} parent=1 // pred_region
      %275 = dma.done [#allocation28], 512
    $region141: #{tpu_custom_call.1} parent=1 // pred_fallthru
      _
    %v276 = vld [vmem:[#allocation3] sm:$0xf]
    %v277 = vld [vmem:[#allocation6] sm:$0xff]
    %v278 = vld [vmem:[#allocation6 + $0x8] sm:$0xff]
    %v279 = vld [vmem:[#allocation8] sm:$0x1]
    %v281 = vlaneseq
    %v282 = vshrl.u32 %v281, 7
    %v283 = vsub.s32 0, %v282
    %v284 = vrot.slane %v279, %v283
    %vm286 = vcmask 130048
    %v288 = vsel %vm286, %v276, 0
    %290 = vmatprep.subr.mxu0 0.0
    %291 = vmatpush1.msra.mxu0 %v277
    %292 = vmatprep.subr.mxu0 0.0
    %293 = vmatpush1.msra.mxu0 %v278
    %294 = vmatprep.subr.mxu0 0.0
    %295 = vmatpush1.msra.mxu0 0.0
    %296 = vmatprep.subr.mxu0 0.0
    %297 = vmatpush1.msra.mxu0 0.0
    %298 = vmatprep.subr.mxu0 0.0
    %299 = vmatpush1.msra.mxu0 0.0
    %300 = vmatprep.subr.mxu0 0.0
    %301 = vmatpush1.msra.mxu0 0.0
    %302 = vmatprep.subr.mxu0 0.0
    %303 = vmatpush1.msra.mxu0 0.0
    %304 = vmatprep.subr.mxu0 0.0
    %305 = vmatpush1.msra.mxu0 0.0
    %306 = vmatprep.subr.mxu0 0.0
    %307 = vmatpush1.msra.mxu0 0.0
    %308 = vmatprep.subr.mxu0 0.0
    %309 = vmatpush1.msra.mxu0 0.0
    %310 = vmatprep.subr.mxu0 0.0
    %311 = vmatpush1.msra.mxu0 0.0
    %312 = vmatprep.subr.mxu0 0.0
    %313 = vmatpush1.msra.mxu0 0.0
    %314 = vmatprep.subr.mxu0 0.0
    %315 = vmatpush1.msra.mxu0 0.0
    %316 = vmatprep.subr.mxu0 0.0
    %317 = vmatpush1.msra.mxu0 0.0
    %318 = vmatprep.subr.mxu0 0.0
    %319 = vmatpush1.msra.mxu0 0.0
    %320 = vmatprep.subr.mxu0 0.0
    %321 = vmatpush1.msra.mxu0 0.0
    %322 = vmatprep.subr.mxu0 0.0
    %323 = vmatpush1.msra.mxu0 0.0
    %324 = vmatprep.subr.mxu0 0.0
    %325 = vmatpush1.msra.mxu0 0.0
    %326 = vmatprep.subr.mxu0 0.0
    %327 = vmatpush1.msra.mxu0 0.0
    %328 = vmatprep.subr.mxu0 0.0
    %329 = vmatpush1.msra.mxu0 0.0
    %330 = vmatprep.subr.mxu0 0.0
    %331 = vmatpush1.msra.mxu0 0.0
    %332 = vmatprep.subr.mxu0 0.0
    %333 = vmatpush1.msra.mxu0 0.0
    %334 = vmatprep.subr.mxu0 0.0
    %335 = vmatpush1.msra.mxu0 0.0
    %336 = vmatprep.subr.mxu0 0.0
    %337 = vmatpush1.msra.mxu0 0.0
    %338 = vmatprep.subr.mxu0 0.0
    %339 = vmatpush1.msra.mxu0 0.0
    %340 = vmatprep.subr.mxu0 0.0
    %341 = vmatpush1.msra.mxu0 0.0
    %342 = vmatprep.subr.mxu0 0.0
    %343 = vmatpush1.msra.mxu0 0.0
    %344 = vmatprep.subr.mxu0 0.0
    %345 = vmatpush1.msra.mxu0 0.0
    %346 = vmatprep.subr.mxu0 0.0
    %347 = vmatpush1.msra.mxu0 0.0
    %348 = vmatprep.subr.mxu0 0.0
    %349 = vmatpush1.msra.mxu0 0.0
    %350 = vmatprep.subr.mxu0 0.0
    %351 = vmatpush1.msra.mxu0 0.0
    %352 = vmatprep.subr.mxu0 0.0
    %353 = vmatpush1.msra.mxu0 0.0
    %354 = vmatprep.mubr.f32.mxu0 0.0
    %355 = vmatmul.mubr.f32.gmra.mrb[0].mxu0 %v288
    %v356 = vpop.f32.mrb[0].mxu0
    %v357 = vadd.f32 %v284, %v356
    %v358 = vpop.f32.mrb[0].mxu0
    %359 = vdwg.mxu0
    %v360 = vmax.f32 %v357, 0.0
    %v361 = vld [vmem:[#allocation9] sm:$0xff]
    %v362 = vld [vmem:[#allocation9 + $0x8] sm:$0xff]
    %v363 = vld [vmem:[#allocation9 + $0x10] sm:$0xff]
    %v364 = vld [vmem:[#allocation9 + $0x18] sm:$0xff]
    %v365 = vld [vmem:[#allocation11] sm:$0x1]
    %v367 = vlaneseq
    %v368 = vshrl.u32 %v367, 7
    %v369 = vsub.s32 0, %v368
    %v370 = vrot.slane %v365, %v369
    %vm372 = vcmask 261120
    %v374 = vsel %vm372, %v360, 0
    %376 = vmatprep.subr.mxu0 0.0
    %377 = vmatpush1.msra.mxu0 %v361
    %378 = vmatprep.subr.mxu0 0.0
    %379 = vmatpush1.msra.mxu0 %v362
    %380 = vmatprep.subr.mxu0 0.0
    %381 = vmatpush1.msra.mxu0 %v363
    %382 = vmatprep.subr.mxu0 0.0
    %383 = vmatpush1.msra.mxu0 %v364
    %384 = vmatprep.subr.mxu0 0.0
    %385 = vmatpush1.msra.mxu0 0.0
    %386 = vmatprep.subr.mxu0 0.0
    %387 = vmatpush1.msra.mxu0 0.0
    %388 = vmatprep.subr.mxu0 0.0
    %389 = vmatpush1.msra.mxu0 0.0
    %390 = vmatprep.subr.mxu0 0.0
    %391 = vmatpush1.msra.mxu0 0.0
    %392 = vmatprep.subr.mxu0 0.0
    %393 = vmatpush1.msra.mxu0 0.0
    %394 = vmatprep.subr.mxu0 0.0
    %395 = vmatpush1.msra.mxu0 0.0
    %396 = vmatprep.subr.mxu0 0.0
    %397 = vmatpush1.msra.mxu0 0.0
    %398 = vmatprep.subr.mxu0 0.0
    %399 = vmatpush1.msra.mxu0 0.0
    %400 = vmatprep.subr.mxu0 0.0
    %401 = vmatpush1.msra.mxu0 0.0
    %402 = vmatprep.subr.mxu0 0.0
    %403 = vmatpush1.msra.mxu0 0.0
    %404 = vmatprep.subr.mxu0 0.0
    %405 = vmatpush1.msra.mxu0 0.0
    %406 = vmatprep.subr.mxu0 0.0
    %407 = vmatpush1.msra.mxu0 0.0
    %408 = vmatprep.subr.mxu0 0.0
    %409 = vmatpush1.msra.mxu0 0.0
    %410 = vmatprep.subr.mxu0 0.0
    %411 = vmatpush1.msra.mxu0 0.0
    %412 = vmatprep.subr.mxu0 0.0
    %413 = vmatpush1.msra.mxu0 0.0
    %414 = vmatprep.subr.mxu0 0.0
    %415 = vmatpush1.msra.mxu0 0.0
    %416 = vmatprep.subr.mxu0 0.0
    %417 = vmatpush1.msra.mxu0 0.0
    %418 = vmatprep.subr.mxu0 0.0
    %419 = vmatpush1.msra.mxu0 0.0
    %420 = vmatprep.subr.mxu0 0.0
    %421 = vmatpush1.msra.mxu0 0.0
    %422 = vmatprep.subr.mxu0 0.0
    %423 = vmatpush1.msra.mxu0 0.0
    %424 = vmatprep.subr.mxu0 0.0
    %425 = vmatpush1.msra.mxu0 0.0
    %426 = vmatprep.subr.mxu0 0.0
    %427 = vmatpush1.msra.mxu0 0.0
    %428 = vmatprep.subr.mxu0 0.0
    %429 = vmatpush1.msra.mxu0 0.0
    %430 = vmatprep.subr.mxu0 0.0
    %431 = vmatpush1.msra.mxu0 0.0
    %432 = vmatprep.subr.mxu0 0.0
    %433 = vmatpush1.msra.mxu0 0.0
    %434 = vmatprep.subr.mxu0 0.0
    %435 = vmatpush1.msra.mxu0 0.0
    %436 = vmatprep.subr.mxu0 0.0
    %437 = vmatpush1.msra.mxu0 0.0
    %438 = vmatprep.subr.mxu0 0.0
    %439 = vmatpush1.msra.mxu0 0.0
    %440 = vmatprep.mubr.f32.mxu0 0.0
    %441 = vmatmul.mubr.f32.gmra.mrb[0].mxu0 %v374
    %v442 = vpop.f32.mrb[0].mxu0
    %v443 = vadd.f32 %v370, %v442
    %v444 = vpop.f32.mrb[0].mxu0
    %445 = vdwg.mxu0
    %v446 = vmax.f32 %v443, 0.0
    %v447 = vld [vmem:[#allocation12] sm:$0xf]
    %v448 = vld [vmem:[#allocation14] sm:$0xff]
    %v449 = vld [vmem:[#allocation14 + $0x8] sm:$0xff]
    %v450 = vld [vmem:[#allocation14 + $0x10] sm:$0xff]
    %v451 = vld [vmem:[#allocation14 + $0x18] sm:$0xff]
    %v452 = vld [vmem:[#allocation14 + $0x20] sm:$0xff]
    %v453 = vld [vmem:[#allocation14 + $0x28] sm:$0xff]
    %v454 = vld [vmem:[#allocation14 + $0x30] sm:$0xff]
    %v455 = vld [vmem:[#allocation14 + $0x38] sm:$0xff]
    %v456 = vlaneseq
    %v457 = vand.u32 %v456, 127
    %458 = vset.pattern.permute.xlu0 0
    %459 = vperm.xlu0 %458, %v447
    %v460 = vpop.permute.xlu0 %459
    %vm461 = vcmp.eq.s32.totalorder %v460, %v457
    %v462 = vsel %vm461, 1, 0
    %v463 = vcvt.s32.f32 %v462
    %v464 = vadd.f32 %v463, 0.0
    %465 = vset.pattern.permute.xlu0 1
    %466 = vperm.xlu0 %465, %v447
    %v467 = vpop.permute.xlu0 %466
    %vm468 = vcmp.eq.s32.totalorder %v467, %v457
    %v469 = vsel %vm468, 1, 0
    %v470 = vcvt.s32.f32 %v469
    %v471 = vadd.f32 %v464, %v470
    %472 = vset.pattern.permute.xlu0 2
    %473 = vperm.xlu0 %472, %v447
    %v474 = vpop.permute.xlu0 %473
    %vm475 = vcmp.eq.s32.totalorder %v474, %v457
    %v476 = vsel %vm475, 1, 0
    %v477 = vcvt.s32.f32 %v476
    %v478 = vadd.f32 %v471, %v477
    %479 = vset.pattern.permute.xlu0 3
    %480 = vperm.xlu0 %479, %v447
    %v481 = vpop.permute.xlu0 %480
    %vm482 = vcmp.eq.s32.totalorder %v481, %v457
    %v483 = vsel %vm482, 1, 0
    %v484 = vcvt.s32.f32 %v483
    %v485 = vadd.f32 %v478, %v484
    %486 = vset.pattern.permute.xlu0 4
    %487 = vperm.xlu0 %486, %v447
    %v488 = vpop.permute.xlu0 %487
    %vm489 = vcmp.eq.s32.totalorder %v488, %v457
    %v490 = vsel %vm489, 1, 0
    %v491 = vcvt.s32.f32 %v490
    %v492 = vadd.f32 %v485, %v491
    %493 = vset.pattern.permute.xlu0 5
    %494 = vperm.xlu0 %493, %v447
    %v495 = vpop.permute.xlu0 %494
    %vm496 = vcmp.eq.s32.totalorder %v495, %v457
    %v497 = vsel %vm496, 1, 0
    %v498 = vcvt.s32.f32 %v497
    %v499 = vadd.f32 %v492, %v498
    %500 = vset.pattern.permute.xlu0 6
    %501 = vperm.xlu0 %500, %v447
    %v502 = vpop.permute.xlu0 %501
    %vm503 = vcmp.eq.s32.totalorder %v502, %v457
    %v504 = vsel %vm503, 1, 0
    %v505 = vcvt.s32.f32 %v504
    %v506 = vadd.f32 %v499, %v505
    %507 = vset.pattern.permute.xlu0 7
    %508 = vperm.xlu0 %507, %v447
    %v509 = vpop.permute.xlu0 %508
    %vm510 = vcmp.eq.s32.totalorder %v509, %v457
    %v511 = vsel %vm510, 1, 0
    %v512 = vcvt.s32.f32 %v511
    %v513 = vadd.f32 %v506, %v512
    %vm514 = vcmask 523264
    %v516 = vsel %vm514, %v513, 0
    %518 = vmatprep.subr.mxu0 0.0
    %519 = vmatpush1.msra.mxu0 %v448
    %520 = vmatprep.subr.mxu0 0.0
    %521 = vmatpush1.msra.mxu0 %v449
    %522 = vmatprep.subr.mxu0 0.0
    %523 = vmatpush1.msra.mxu0 %v450
    %524 = vmatprep.subr.mxu0 0.0
    %525 = vmatpush1.msra.mxu0 %v451
    %526 = vmatprep.subr.mxu0 0.0
    %527 = vmatpush1.msra.mxu0 %v452
    %528 = vmatprep.subr.mxu0 0.0
    %529 = vmatpush1.msra.mxu0 %v453
    %530 = vmatprep.subr.mxu0 0.0
    %531 = vmatpush1.msra.mxu0 %v454
    %532 = vmatprep.subr.mxu0 0.0
    %533 = vmatpush1.msra.mxu0 %v455
    %534 = vmatprep.subr.mxu0 0.0
    %535 = vmatpush1.msra.mxu0 0.0
    %536 = vmatprep.subr.mxu0 0.0
    %537 = vmatpush1.msra.mxu0 0.0
    %538 = vmatprep.subr.mxu0 0.0
    %539 = vmatpush1.msra.mxu0 0.0
    %540 = vmatprep.subr.mxu0 0.0
    %541 = vmatpush1.msra.mxu0 0.0
    %542 = vmatprep.subr.mxu0 0.0
    %543 = vmatpush1.msra.mxu0 0.0
    %544 = vmatprep.subr.mxu0 0.0
    %545 = vmatpush1.msra.mxu0 0.0
    %546 = vmatprep.subr.mxu0 0.0
    %547 = vmatpush1.msra.mxu0 0.0
    %548 = vmatprep.subr.mxu0 0.0
    %549 = vmatpush1.msra.mxu0 0.0
    %550 = vmatprep.subr.mxu0 0.0
    %551 = vmatpush1.msra.mxu0 0.0
    %552 = vmatprep.subr.mxu0 0.0
    %553 = vmatpush1.msra.mxu0 0.0
    %554 = vmatprep.subr.mxu0 0.0
    %555 = vmatpush1.msra.mxu0 0.0
    %556 = vmatprep.subr.mxu0 0.0
    %557 = vmatpush1.msra.mxu0 0.0
    %558 = vmatprep.subr.mxu0 0.0
    %559 = vmatpush1.msra.mxu0 0.0
    %560 = vmatprep.subr.mxu0 0.0
    %561 = vmatpush1.msra.mxu0 0.0
    %562 = vmatprep.subr.mxu0 0.0
    %563 = vmatpush1.msra.mxu0 0.0
    %564 = vmatprep.subr.mxu0 0.0
    %565 = vmatpush1.msra.mxu0 0.0
    %566 = vmatprep.subr.mxu0 0.0
    %567 = vmatpush1.msra.mxu0 0.0
    %568 = vmatprep.subr.mxu0 0.0
    %569 = vmatpush1.msra.mxu0 0.0
    %570 = vmatprep.subr.mxu0 0.0
    %571 = vmatpush1.msra.mxu0 0.0
    %572 = vmatprep.subr.mxu0 0.0
    %573 = vmatpush1.msra.mxu0 0.0
    %574 = vmatprep.subr.mxu0 0.0
    %575 = vmatpush1.msra.mxu0 0.0
    %576 = vmatprep.subr.mxu0 0.0
    %577 = vmatpush1.msra.mxu0 0.0
    %578 = vmatprep.subr.mxu0 0.0
    %579 = vmatpush1.msra.mxu0 0.0
    %580 = vmatprep.subr.mxu0 0.0
    %581 = vmatpush1.msra.mxu0 0.0
    %582 = vmatprep.mubr.f32.mxu0 0.0
    %583 = vmatmul.mubr.f32.gmra.mrb[0].mxu0 %v516
    %v584 = vpop.f32.mrb[0].mxu0
    %v585 = vadd.f32 0.0, %v584
    %v586 = vpop.f32.mrb[0].mxu0
    %587 = vdwg.mxu0
    %s588 = scalar_lea.vmem [#allocation12], 4
    %v589 = vld [vmem:[%s588] sm:$0xf]
    %s590 = scalar_lea.vmem [#allocation14], 64
    %v591 = vld [vmem:[%s590] sm:$0xff]
    %v592 = vld [vmem:[%s590 + $0x8] sm:$0xff]
    %v593 = vld [vmem:[%s590 + $0x10] sm:$0xff]
    %v594 = vld [vmem:[%s590 + $0x18] sm:$0xff]
    %v595 = vld [vmem:[%s590 + $0x20] sm:$0xff]
    %v596 = vld [vmem:[%s590 + $0x28] sm:$0xff]
    %v597 = vld [vmem:[%s590 + $0x30] sm:$0xff]
    %v598 = vld [vmem:[%s590 + $0x38] sm:$0xff]
    %599 = vset.pattern.permute.xlu0 0
    %600 = vperm.xlu0 %599, %v589
    %v601 = vpop.permute.xlu0 %600
    %vm602 = vcmp.eq.s32.totalorder %v601, %v457
    %v603 = vsel %vm602, 1, 0
    %v604 = vcvt.s32.f32 %v603
    %v605 = vadd.f32 %v604, 0.0
    %606 = vset.pattern.permute.xlu0 1
    %607 = vperm.xlu0 %606, %v589
    %v608 = vpop.permute.xlu0 %607
    %vm609 = vcmp.eq.s32.totalorder %v608, %v457
    %v610 = vsel %vm609, 1, 0
    %v611 = vcvt.s32.f32 %v610
    %v612 = vadd.f32 %v605, %v611
    %613 = vset.pattern.permute.xlu0 2
    %614 = vperm.xlu0 %613, %v589
    %v615 = vpop.permute.xlu0 %614
    %vm616 = vcmp.eq.s32.totalorder %v615, %v457
    %v617 = vsel %vm616, 1, 0
    %v618 = vcvt.s32.f32 %v617
    %v619 = vadd.f32 %v612, %v618
    %620 = vset.pattern.permute.xlu0 3
    %621 = vperm.xlu0 %620, %v589
    %v622 = vpop.permute.xlu0 %621
    %vm623 = vcmp.eq.s32.totalorder %v622, %v457
    %v624 = vsel %vm623, 1, 0
    %v625 = vcvt.s32.f32 %v624
    %v626 = vadd.f32 %v619, %v625
    %627 = vset.pattern.permute.xlu0 4
    %628 = vperm.xlu0 %627, %v589
    %v629 = vpop.permute.xlu0 %628
    %vm630 = vcmp.eq.s32.totalorder %v629, %v457
    %v631 = vsel %vm630, 1, 0
    %v632 = vcvt.s32.f32 %v631
    %v633 = vadd.f32 %v626, %v632
    %634 = vset.pattern.permute.xlu0 5
    %635 = vperm.xlu0 %634, %v589
    %v636 = vpop.permute.xlu0 %635
    %vm637 = vcmp.eq.s32.totalorder %v636, %v457
    %v638 = vsel %vm637, 1, 0
    %v639 = vcvt.s32.f32 %v638
    %v640 = vadd.f32 %v633, %v639
    %641 = vset.pattern.permute.xlu0 6
    %642 = vperm.xlu0 %641, %v589
    %v643 = vpop.permute.xlu0 %642
    %vm644 = vcmp.eq.s32.totalorder %v643, %v457
    %v645 = vsel %vm644, 1, 0
    %v646 = vcvt.s32.f32 %v645
    %v647 = vadd.f32 %v640, %v646
    %648 = vset.pattern.permute.xlu0 7
    %649 = vperm.xlu0 %648, %v589
    %v650 = vpop.permute.xlu0 %649
    %vm651 = vcmp.eq.s32.totalorder %v650, %v457
    %v652 = vsel %vm651, 1, 0
    %v653 = vcvt.s32.f32 %v652
    %v654 = vadd.f32 %v647, %v653
    %v656 = vsel %vm514, %v654, 0
    %658 = vmatprep.subr.mxu0 0.0
    %659 = vmatpush1.msra.mxu0 %v591
    %660 = vmatprep.subr.mxu0 0.0
    %661 = vmatpush1.msra.mxu0 %v592
    %662 = vmatprep.subr.mxu0 0.0
    %663 = vmatpush1.msra.mxu0 %v593
    %664 = vmatprep.subr.mxu0 0.0
    %665 = vmatpush1.msra.mxu0 %v594
    %666 = vmatprep.subr.mxu0 0.0
    %667 = vmatpush1.msra.mxu0 %v595
    %668 = vmatprep.subr.mxu0 0.0
    %669 = vmatpush1.msra.mxu0 %v596
    %670 = vmatprep.subr.mxu0 0.0
    %671 = vmatpush1.msra.mxu0 %v597
    %672 = vmatprep.subr.mxu0 0.0
    %673 = vmatpush1.msra.mxu0 %v598
    %674 = vmatprep.subr.mxu0 0.0
    %675 = vmatpush1.msra.mxu0 0.0
    %676 = vmatprep.subr.mxu0 0.0
    %677 = vmatpush1.msra.mxu0 0.0
    %678 = vmatprep.subr.mxu0 0.0
    %679 = vmatpush1.msra.mxu0 0.0
    %680 = vmatprep.subr.mxu0 0.0
    %681 = vmatpush1.msra.mxu0 0.0
    %682 = vmatprep.subr.mxu0 0.0
    %683 = vmatpush1.msra.mxu0 0.0
    %684 = vmatprep.subr.mxu0 0.0
    %685 = vmatpush1.msra.mxu0 0.0
    %686 = vmatprep.subr.mxu0 0.0
    %687 = vmatpush1.msra.mxu0 0.0
    %688 = vmatprep.subr.mxu0 0.0
    %689 = vmatpush1.msra.mxu0 0.0
    %690 = vmatprep.subr.mxu0 0.0
    %691 = vmatpush1.msra.mxu0 0.0
    %692 = vmatprep.subr.mxu0 0.0
    %693 = vmatpush1.msra.mxu0 0.0
    %694 = vmatprep.subr.mxu0 0.0
    %695 = vmatpush1.msra.mxu0 0.0
    %696 = vmatprep.subr.mxu0 0.0
    %697 = vmatpush1.msra.mxu0 0.0
    %698 = vmatprep.subr.mxu0 0.0
    %699 = vmatpush1.msra.mxu0 0.0
    %700 = vmatprep.subr.mxu0 0.0
    %701 = vmatpush1.msra.mxu0 0.0
    %702 = vmatprep.subr.mxu0 0.0
    %703 = vmatpush1.msra.mxu0 0.0
    %704 = vmatprep.subr.mxu0 0.0
    %705 = vmatpush1.msra.mxu0 0.0
    %706 = vmatprep.subr.mxu0 0.0
    %707 = vmatpush1.msra.mxu0 0.0
    %708 = vmatprep.subr.mxu0 0.0
    %709 = vmatpush1.msra.mxu0 0.0
    %710 = vmatprep.subr.mxu0 0.0
    %711 = vmatpush1.msra.mxu0 0.0
    %712 = vmatprep.subr.mxu0 0.0
    %713 = vmatpush1.msra.mxu0 0.0
    %714 = vmatprep.subr.mxu0 0.0
    %715 = vmatpush1.msra.mxu0 0.0
    %716 = vmatprep.subr.mxu0 0.0
    %717 = vmatpush1.msra.mxu0 0.0
    %718 = vmatprep.subr.mxu0 0.0
    %719 = vmatpush1.msra.mxu0 0.0
    %720 = vmatprep.subr.mxu0 0.0
    %721 = vmatpush1.msra.mxu0 0.0
    %722 = vmatprep.mubr.f32.mxu0 0.0
    %723 = vmatmul.mubr.f32.gmra.mrb[0].mxu0 %v656
    %v724 = vpop.f32.mrb[0].mxu0
    %v725 = vadd.f32 0.0, %v724
    %v726 = vpop.f32.mrb[0].mxu0
    %727 = vdwg.mxu0
    %v728 = vld [vmem:[#allocation15] sm:$0xff]
    %v729 = vld [vmem:[#allocation15 + $0x8] sm:$0xff]
    %v730 = vld [vmem:[#allocation15 + $0x10] sm:$0xff]
    %v731 = vld [vmem:[#allocation15 + $0x18] sm:$0xff]
    %v732 = vld [vmem:[#allocation17] sm:$0x1]
    %733 = vset.pattern.permute.xlu0 0
    %734 = vperm.xlu0 %733, %v728
    %v735 = vpop.permute.xlu0 %734
    %736 = vset.pattern.permute.xlu0 0
    %737 = vperm.xlu0 %736, %v729
    %v738 = vpop.permute.xlu0 %737
    %739 = vset.pattern.permute.xlu0 0
    %740 = vperm.xlu0 %739, %v730
    %v741 = vpop.permute.xlu0 %740
    %742 = vset.pattern.permute.xlu0 0
    %743 = vperm.xlu0 %742, %v731
    %v744 = vpop.permute.xlu0 %743
    %v745 = vlaneseq
    %v746 = vshrl.u32 %v745, 7
    %v747 = vsub.s32 0, %v746
    %v748 = vrot.slane %v732, %v747
    %v749 = vmul.u32 %v735, %v748
    %v750 = vmul.u32 %v738, %v748
    %v751 = vmul.u32 %v741, %v748
    %v752 = vmul.u32 %v744, %v748
    %v753 = vld [vmem:[#allocation18] sm:$0x1]
    %v754 = vlaneseq
    %v755 = vshrl.u32 %v754, 7
    %v756 = vsub.s32 0, %v755
    %v757 = vrot.slane %v753, %v756
    %v758 = vadd.s32 %v749, %v757
    %v759 = vadd.s32 %v750, %v757
    %v760 = vadd.s32 %v751, %v757
    %v761 = vadd.s32 %v752, %v757
    %v762 = vand.u32 %v758, 1023
    %v763 = vand.u32 %v759, 1023
    %v764 = vand.u32 %v760, 1023
    %v765 = vand.u32 %v761, 1023
    %v766 = vcvt.s32.f32 %v762
    %v767 = vcvt.s32.f32 %v763
    %v768 = vcvt.s32.f32 %v764
    %v769 = vcvt.s32.f32 %v765
    %v770 = vmul.f32 %v766, 0.0019550342
    %v771 = vmul.f32 %v767, 0.0019550342
    %v772 = vmul.f32 %v768, 0.0019550342
    %v773 = vmul.f32 %v769, 0.0019550342
    %v774 = vsub.f32 %v770, 1.0
    %v775 = vsub.f32 %v771, 1.0
    %v776 = vsub.f32 %v772, 1.0
    %v777 = vsub.f32 %v773, 1.0
    %v778 = vld [vmem:[#allocation20] sm:$0xff]
    %v779 = vld [vmem:[#allocation20 + $0x8] sm:$0xff]
    %v780 = vld [vmem:[#allocation21] sm:$0x1]
    %v782 = vlaneseq
    %v783 = vshrl.u32 %v782, 7
    %v784 = vsub.s32 0, %v783
    %v785 = vrot.slane %v780, %v784
    %v788 = vsel %vm286, %v774, 0
    %v791 = vsel %vm286, %v775, 0
    %v794 = vsel %vm286, %v776, 0
    %v797 = vsel %vm286, %v777, 0
    %799 = vmatprep.subr.mxu0 0.0
    %800 = vmatpush1.msra.mxu0 %v778
    %801 = vmatprep.subr.mxu0 0.0
    %802 = vmatpush1.msra.mxu0 %v779
    %803 = vmatprep.subr.mxu0 0.0
    %804 = vmatpush1.msra.mxu0 0.0
    %805 = vmatprep.subr.mxu0 0.0
    %806 = vmatpush1.msra.mxu0 0.0
    %807 = vmatprep.subr.mxu0 0.0
    %808 = vmatpush1.msra.mxu0 0.0
    %809 = vmatprep.subr.mxu0 0.0
    %810 = vmatpush1.msra.mxu0 0.0
    %811 = vmatprep.subr.mxu0 0.0
    %812 = vmatpush1.msra.mxu0 0.0
    %813 = vmatprep.subr.mxu0 0.0
    %814 = vmatpush1.msra.mxu0 0.0
    %815 = vmatprep.subr.mxu0 0.0
    %816 = vmatpush1.msra.mxu0 0.0
    %817 = vmatprep.subr.mxu0 0.0
    %818 = vmatpush1.msra.mxu0 0.0
    %819 = vmatprep.subr.mxu0 0.0
    %820 = vmatpush1.msra.mxu0 0.0
    %821 = vmatprep.subr.mxu0 0.0
    %822 = vmatpush1.msra.mxu0 0.0
    %823 = vmatprep.subr.mxu0 0.0
    %824 = vmatpush1.msra.mxu0 0.0
    %825 = vmatprep.subr.mxu0 0.0
    %826 = vmatpush1.msra.mxu0 0.0
    %827 = vmatprep.subr.mxu0 0.0
    %828 = vmatpush1.msra.mxu0 0.0
    %829 = vmatprep.subr.mxu0 0.0
    %830 = vmatpush1.msra.mxu0 0.0
    %831 = vmatprep.subr.mxu0 0.0
    %832 = vmatpush1.msra.mxu0 0.0
    %833 = vmatprep.subr.mxu0 0.0
    %834 = vmatpush1.msra.mxu0 0.0
    %835 = vmatprep.subr.mxu0 0.0
    %836 = vmatpush1.msra.mxu0 0.0
    %837 = vmatprep.subr.mxu0 0.0
    %838 = vmatpush1.msra.mxu0 0.0
    %839 = vmatprep.subr.mxu0 0.0
    %840 = vmatpush1.msra.mxu0 0.0
    %841 = vmatprep.subr.mxu0 0.0
    %842 = vmatpush1.msra.mxu0 0.0
    %843 = vmatprep.subr.mxu0 0.0
    %844 = vmatpush1.msra.mxu0 0.0
    %845 = vmatprep.subr.mxu0 0.0
    %846 = vmatpush1.msra.mxu0 0.0
    %847 = vmatprep.subr.mxu0 0.0
    %848 = vmatpush1.msra.mxu0 0.0
    %849 = vmatprep.subr.mxu0 0.0
    %850 = vmatpush1.msra.mxu0 0.0
    %851 = vmatprep.subr.mxu0 0.0
    %852 = vmatpush1.msra.mxu0 0.0
    %853 = vmatprep.subr.mxu0 0.0
    %854 = vmatpush1.msra.mxu0 0.0
    %855 = vmatprep.subr.mxu0 0.0
    %856 = vmatpush1.msra.mxu0 0.0
    %857 = vmatprep.subr.mxu0 0.0
    %858 = vmatpush1.msra.mxu0 0.0
    %859 = vmatprep.subr.mxu0 0.0
    %860 = vmatpush1.msra.mxu0 0.0
    %861 = vmatprep.subr.mxu0 0.0
    %862 = vmatpush1.msra.mxu0 0.0
    %863 = vmatprep.mubr.f32.mxu0 0.0
    %864 = vmatmul.mubr.f32.gmra.mrb[0].mxu0 %v788
    %v865 = vpop.f32.mrb[0].mxu0
    %v866 = vadd.f32 %v785, %v865
    %v867 = vpop.f32.mrb[0].mxu0
    %868 = vmatprep.mubr.f32.mxu0 0.0
    %869 = vmatmul.mubr.f32.gmra.mrb[0].mxu0 %v791
    %v870 = vpop.f32.mrb[0].mxu0
    %v871 = vadd.f32 %v785, %v870
    %v872 = vpop.f32.mrb[0].mxu0
    %873 = vmatprep.mubr.f32.mxu0 0.0
    %874 = vmatmul.mubr.f32.gmra.mrb[0].mxu0 %v794
    %v875 = vpop.f32.mrb[0].mxu0
    %v876 = vadd.f32 %v785, %v875
    %v877 = vpop.f32.mrb[0].mxu0
    %878 = vmatprep.mubr.f32.mxu0 0.0
    %879 = vmatmul.mubr.f32.gmra.mrb[0].mxu0 %v797
    %v880 = vpop.f32.mrb[0].mxu0
    %v881 = vadd.f32 %v785, %v880
    %v882 = vpop.f32.mrb[0].mxu0
    %883 = vdwg.mxu0
    %v884 = vmax.f32 %v866, 0.0
    %v885 = vmax.f32 %v871, 0.0
    %v886 = vmax.f32 %v876, 0.0
    %v887 = vmax.f32 %v881, 0.0
    %v888 = vld [vmem:[#allocation23] sm:$0xff]
    %v889 = vld [vmem:[#allocation23 + $0x8] sm:$0xff]
    %v890 = vld [vmem:[#allocation23 + $0x10] sm:$0xff]
    %v891 = vld [vmem:[#allocation23 + $0x18] sm:$0xff]
    %v892 = vld [vmem:[#allocation24] sm:$0x1]
    %v894 = vlaneseq
    %v895 = vshrl.u32 %v894, 7
    %v896 = vsub.s32 0, %v895
    %v897 = vrot.slane %v892, %v896
    %v900 = vsel %vm372, %v884, 0
    %v903 = vsel %vm372, %v885, 0
    %v906 = vsel %vm372, %v886, 0
    %v909 = vsel %vm372, %v887, 0
    %911 = vmatprep.subr.mxu0 0.0
    %912 = vmatpush1.msra.mxu0 %v888
    %913 = vmatprep.subr.mxu0 0.0
    %914 = vmatpush1.msra.mxu0 %v889
    %915 = vmatprep.subr.mxu0 0.0
    %916 = vmatpush1.msra.mxu0 %v890
    %917 = vmatprep.subr.mxu0 0.0
    %918 = vmatpush1.msra.mxu0 %v891
    %919 = vmatprep.subr.mxu0 0.0
    %920 = vmatpush1.msra.mxu0 0.0
    %921 = vmatprep.subr.mxu0 0.0
    %922 = vmatpush1.msra.mxu0 0.0
    %923 = vmatprep.subr.mxu0 0.0
    %924 = vmatpush1.msra.mxu0 0.0
    %925 = vmatprep.subr.mxu0 0.0
    %926 = vmatpush1.msra.mxu0 0.0
    %927 = vmatprep.subr.mxu0 0.0
    %928 = vmatpush1.msra.mxu0 0.0
    %929 = vmatprep.subr.mxu0 0.0
    %930 = vmatpush1.msra.mxu0 0.0
    %931 = vmatprep.subr.mxu0 0.0
    %932 = vmatpush1.msra.mxu0 0.0
    %933 = vmatprep.subr.mxu0 0.0
    %934 = vmatpush1.msra.mxu0 0.0
    %935 = vmatprep.subr.mxu0 0.0
    %936 = vmatpush1.msra.mxu0 0.0
    %937 = vmatprep.subr.mxu0 0.0
    %938 = vmatpush1.msra.mxu0 0.0
    %939 = vmatprep.subr.mxu0 0.0
    %940 = vmatpush1.msra.mxu0 0.0
    %941 = vmatprep.subr.mxu0 0.0
    %942 = vmatpush1.msra.mxu0 0.0
    %943 = vmatprep.subr.mxu0 0.0
    %944 = vmatpush1.msra.mxu0 0.0
    %945 = vmatprep.subr.mxu0 0.0
    %946 = vmatpush1.msra.mxu0 0.0
    %947 = vmatprep.subr.mxu0 0.0
    %948 = vmatpush1.msra.mxu0 0.0
    %949 = vmatprep.subr.mxu0 0.0
    %950 = vmatpush1.msra.mxu0 0.0
    %951 = vmatprep.subr.mxu0 0.0
    %952 = vmatpush1.msra.mxu0 0.0
    %953 = vmatprep.subr.mxu0 0.0
    %954 = vmatpush1.msra.mxu0 0.0
    %955 = vmatprep.subr.mxu0 0.0
    %956 = vmatpush1.msra.mxu0 0.0
    %957 = vmatprep.subr.mxu0 0.0
    %958 = vmatpush1.msra.mxu0 0.0
    %959 = vmatprep.subr.mxu0 0.0
    %960 = vmatpush1.msra.mxu0 0.0
    %961 = vmatprep.subr.mxu0 0.0
    %962 = vmatpush1.msra.mxu0 0.0
    %963 = vmatprep.subr.mxu0 0.0
    %964 = vmatpush1.msra.mxu0 0.0
    %965 = vmatprep.subr.mxu0 0.0
    %966 = vmatpush1.msra.mxu0 0.0
    %967 = vmatprep.subr.mxu0 0.0
    %968 = vmatpush1.msra.mxu0 0.0
    %969 = vmatprep.subr.mxu0 0.0
    %970 = vmatpush1.msra.mxu0 0.0
    %971 = vmatprep.subr.mxu0 0.0
    %972 = vmatpush1.msra.mxu0 0.0
    %973 = vmatprep.subr.mxu0 0.0
    %974 = vmatpush1.msra.mxu0 0.0
    %975 = vmatprep.mubr.f32.mxu0 0.0
    %976 = vmatmul.mubr.f32.gmra.mrb[0].mxu0 %v900
    %v977 = vpop.f32.mrb[0].mxu0
    %v978 = vadd.f32 %v897, %v977
    %v979 = vpop.f32.mrb[0].mxu0
    %980 = vmatprep.mubr.f32.mxu0 0.0
    %981 = vmatmul.mubr.f32.gmra.mrb[0].mxu0 %v903
    %v982 = vpop.f32.mrb[0].mxu0
    %v983 = vadd.f32 %v897, %v982
    %v984 = vpop.f32.mrb[0].mxu0
    %985 = vmatprep.mubr.f32.mxu0 0.0
    %986 = vmatmul.mubr.f32.gmra.mrb[0].mxu0 %v906
    %v987 = vpop.f32.mrb[0].mxu0
    %v988 = vadd.f32 %v897, %v987
    %v989 = vpop.f32.mrb[0].mxu0
    %990 = vmatprep.mubr.f32.mxu0 0.0
    %991 = vmatmul.mubr.f32.gmra.mrb[0].mxu0 %v909
    %v992 = vpop.f32.mrb[0].mxu0
    %v993 = vadd.f32 %v897, %v992
    %v994 = vpop.f32.mrb[0].mxu0
    %995 = vdwg.mxu0
    %v996 = vlaneseq
    %v997 = vshrl.u32 %v996, 7
    %v998 = vmul.u32 %v997, 8
    %vm999 = vcmp.ge.s32.totalorder %v457, %v998
    %v1000 = vadd.s32 %v998, 8
    %vm1001 = vcmp.lt.s32.totalorder %v457, %v1000
    %vm1002 = vmand %vm999, %vm1001
    %v1003 = vsel %vm1002, 1, 0
    %v1004 = vcvt.s32.f32 %v1003
    %v1006 = vsel %vm372, %v1004, 0
    %1008 = vmatprep.subr.mxu0 0.0
    %1009 = vmatpush1.msra.mxu0 %v978
    %1010 = vmatprep.subr.mxu0 0.0
    %1011 = vmatpush1.msra.mxu0 %v983
    %1012 = vmatprep.subr.mxu0 0.0
    %1013 = vmatpush1.msra.mxu0 %v988
    %1014 = vmatprep.subr.mxu0 0.0
    %1015 = vmatpush1.msra.mxu0 %v993
    %1016 = vmatprep.subr.mxu0 0.0
    %1017 = vmatpush1.msra.mxu0 0.0
    %1018 = vmatprep.subr.mxu0 0.0
    %1019 = vmatpush1.msra.mxu0 0.0
    %1020 = vmatprep.subr.mxu0 0.0
    %1021 = vmatpush1.msra.mxu0 0.0
    %1022 = vmatprep.subr.mxu0 0.0
    %1023 = vmatpush1.msra.mxu0 0.0
    %1024 = vmatprep.subr.mxu0 0.0
    %1025 = vmatpush1.msra.mxu0 0.0
    %1026 = vmatprep.subr.mxu0 0.0
    %1027 = vmatpush1.msra.mxu0 0.0
    %1028 = vmatprep.subr.mxu0 0.0
    %1029 = vmatpush1.msra.mxu0 0.0
    %1030 = vmatprep.subr.mxu0 0.0
    %1031 = vmatpush1.msra.mxu0 0.0
    %1032 = vmatprep.subr.mxu0 0.0
    %1033 = vmatpush1.msra.mxu0 0.0
    %1034 = vmatprep.subr.mxu0 0.0
    %1035 = vmatpush1.msra.mxu0 0.0
    %1036 = vmatprep.subr.mxu0 0.0
    %1037 = vmatpush1.msra.mxu0 0.0
    %1038 = vmatprep.subr.mxu0 0.0
    %1039 = vmatpush1.msra.mxu0 0.0
    %1040 = vmatprep.subr.mxu0 0.0
    %1041 = vmatpush1.msra.mxu0 0.0
    %1042 = vmatprep.subr.mxu0 0.0
    %1043 = vmatpush1.msra.mxu0 0.0
    %1044 = vmatprep.subr.mxu0 0.0
    %1045 = vmatpush1.msra.mxu0 0.0
    %1046 = vmatprep.subr.mxu0 0.0
    %1047 = vmatpush1.msra.mxu0 0.0
    %1048 = vmatprep.subr.mxu0 0.0
    %1049 = vmatpush1.msra.mxu0 0.0
    %1050 = vmatprep.subr.mxu0 0.0
    %1051 = vmatpush1.msra.mxu0 0.0
    %1052 = vmatprep.subr.mxu0 0.0
    %1053 = vmatpush1.msra.mxu0 0.0
    %1054 = vmatprep.subr.mxu0 0.0
    %1055 = vmatpush1.msra.mxu0 0.0
    %1056 = vmatprep.subr.mxu0 0.0
    %1057 = vmatpush1.msra.mxu0 0.0
    %1058 = vmatprep.subr.mxu0 0.0
    %1059 = vmatpush1.msra.mxu0 0.0
    %1060 = vmatprep.subr.mxu0 0.0
    %1061 = vmatpush1.msra.mxu0 0.0
    %1062 = vmatprep.subr.mxu0 0.0
    %1063 = vmatpush1.msra.mxu0 0.0
    %1064 = vmatprep.subr.mxu0 0.0
    %1065 = vmatpush1.msra.mxu0 0.0
    %1066 = vmatprep.subr.mxu0 0.0
    %1067 = vmatpush1.msra.mxu0 0.0
    %1068 = vmatprep.subr.mxu0 0.0
    %1069 = vmatpush1.msra.mxu0 0.0
    %1070 = vmatprep.subr.mxu0 0.0
    %1071 = vmatpush1.msra.mxu0 0.0
    %1072 = vmatprep.mubr.f32.mxu0 0.0
    %1073 = vmatmul.mubr.f32.gmra.mrb[0].mxu0 %v1006
    %v1074 = vpop.f32.mrb[0].mxu0
    %v1075 = vadd.f32 0.0, %v1074
    %v1076 = vpop.f32.mrb[0].mxu0
    %1077 = vdwg.mxu0
    %v1078 = vld [vmem:[#allocation27] sm:$0x1]
    %v1079 = vld [vmem:[#allocation26] sm:$0xff]
    %v1080 = vld [vmem:[#allocation26 + $0x8] sm:$0xff]
    %v1082 = vsel %vm286, %v446, 0
    %1084 = vmatprep.subr.mxu0 0.0
    %1085 = vmatpush1.msra.mxu0 %v1079
    %1086 = vmatprep.subr.mxu0 0.0
    %1087 = vmatpush1.msra.mxu0 %v1080
    %1088 = vmatprep.subr.mxu0 0.0
    %1089 = vmatpush1.msra.mxu0 0.0
    %1090 = vmatprep.subr.mxu0 0.0
    %1091 = vmatpush1.msra.mxu0 0.0
    %1092 = vmatprep.subr.mxu0 0.0
    %1093 = vmatpush1.msra.mxu0 0.0
    %1094 = vmatprep.subr.mxu0 0.0
    %1095 = vmatpush1.msra.mxu0 0.0
    %1096 = vmatprep.subr.mxu0 0.0
    %1097 = vmatpush1.msra.mxu0 0.0
    %1098 = vmatprep.subr.mxu0 0.0
    %1099 = vmatpush1.msra.mxu0 0.0
    %1100 = vmatprep.subr.mxu0 0.0
    %1101 = vmatpush1.msra.mxu0 0.0
    %1102 = vmatprep.subr.mxu0 0.0
    %1103 = vmatpush1.msra.mxu0 0.0
    %1104 = vmatprep.subr.mxu0 0.0
    %1105 = vmatpush1.msra.mxu0 0.0
    %1106 = vmatprep.subr.mxu0 0.0
    %1107 = vmatpush1.msra.mxu0 0.0
    %1108 = vmatprep.subr.mxu0 0.0
    %1109 = vmatpush1.msra.mxu0 0.0
    %1110 = vmatprep.subr.mxu0 0.0
    %1111 = vmatpush1.msra.mxu0 0.0
    %1112 = vmatprep.subr.mxu0 0.0
    %1113 = vmatpush1.msra.mxu0 0.0
    %1114 = vmatprep.subr.mxu0 0.0
    %1115 = vmatpush1.msra.mxu0 0.0
    %1116 = vmatprep.subr.mxu0 0.0
    %1117 = vmatpush1.msra.mxu0 0.0
    %1118 = vmatprep.subr.mxu0 0.0
    %1119 = vmatpush1.msra.mxu0 0.0
    %1120 = vmatprep.subr.mxu0 0.0
    %1121 = vmatpush1.msra.mxu0 0.0
    %1122 = vmatprep.subr.mxu0 0.0
    %1123 = vmatpush1.msra.mxu0 0.0
    %1124 = vmatprep.subr.mxu0 0.0
    %1125 = vmatpush1.msra.mxu0 0.0
    %1126 = vmatprep.subr.mxu0 0.0
    %1127 = vmatpush1.msra.mxu0 0.0
    %1128 = vmatprep.subr.mxu0 0.0
    %1129 = vmatpush1.msra.mxu0 0.0
    %1130 = vmatprep.subr.mxu0 0.0
    %1131 = vmatpush1.msra.mxu0 0.0
    %1132 = vmatprep.subr.mxu0 0.0
    %1133 = vmatpush1.msra.mxu0 0.0
    %1134 = vmatprep.subr.mxu0 0.0
    %1135 = vmatpush1.msra.mxu0 0.0
    %1136 = vmatprep.subr.mxu0 0.0
    %1137 = vmatpush1.msra.mxu0 0.0
    %1138 = vmatprep.subr.mxu0 0.0
    %1139 = vmatpush1.msra.mxu0 0.0
    %1140 = vmatprep.subr.mxu0 0.0
    %1141 = vmatpush1.msra.mxu0 0.0
    %1142 = vmatprep.subr.mxu0 0.0
    %1143 = vmatpush1.msra.mxu0 0.0
    %1144 = vmatprep.subr.mxu0 0.0
    %1145 = vmatpush1.msra.mxu0 0.0
    %1146 = vmatprep.subr.mxu0 0.0
    %1147 = vmatpush1.msra.mxu0 0.0
    %1148 = vmatprep.mubr.f32.mxu0 0.0
    %1149 = vmatmul.mubr.f32.gmra.mrb[0].mxu0 %v1082
    %v1150 = vpop.f32.mrb[0].mxu0
    %v1151 = vadd.f32 0.0, %v1150
    %v1152 = vpop.f32.mrb[0].mxu0
    %1153 = vdwg.mxu0
    %v1155 = vlaneseq
    %v1156 = vshrl.u32 %v1155, 7
    %v1157 = vsub.s32 0, %v1156
    %v1158 = vrot.slane %v1078, %v1157
    %v1160 = vadd.f32 %v1158, %v1151
    %v1161 = vld [vmem:[#allocation26 + $0x10] sm:$0xff]
    %v1162 = vld [vmem:[#allocation26 + $0x18] sm:$0xff]
    %v1164 = vsel %vm286, %v585, 0
    %1166 = vmatprep.subr.mxu0 0.0
    %1167 = vmatpush1.msra.mxu0 %v1161
    %1168 = vmatprep.subr.mxu0 0.0
    %1169 = vmatpush1.msra.mxu0 %v1162
    %1170 = vmatprep.subr.mxu0 0.0
    %1171 = vmatpush1.msra.mxu0 0.0
    %1172 = vmatprep.subr.mxu0 0.0
    %1173 = vmatpush1.msra.mxu0 0.0
    %1174 = vmatprep.subr.mxu0 0.0
    %1175 = vmatpush1.msra.mxu0 0.0
    %1176 = vmatprep.subr.mxu0 0.0
    %1177 = vmatpush1.msra.mxu0 0.0
    %1178 = vmatprep.subr.mxu0 0.0
    %1179 = vmatpush1.msra.mxu0 0.0
    %1180 = vmatprep.subr.mxu0 0.0
    %1181 = vmatpush1.msra.mxu0 0.0
    %1182 = vmatprep.subr.mxu0 0.0
    %1183 = vmatpush1.msra.mxu0 0.0
    %1184 = vmatprep.subr.mxu0 0.0
    %1185 = vmatpush1.msra.mxu0 0.0
    %1186 = vmatprep.subr.mxu0 0.0
    %1187 = vmatpush1.msra.mxu0 0.0
    %1188 = vmatprep.subr.mxu0 0.0
    %1189 = vmatpush1.msra.mxu0 0.0
    %1190 = vmatprep.subr.mxu0 0.0
    %1191 = vmatpush1.msra.mxu0 0.0
    %1192 = vmatprep.subr.mxu0 0.0
    %1193 = vmatpush1.msra.mxu0 0.0
    %1194 = vmatprep.subr.mxu0 0.0
    %1195 = vmatpush1.msra.mxu0 0.0
    %1196 = vmatprep.subr.mxu0 0.0
    %1197 = vmatpush1.msra.mxu0 0.0
    %1198 = vmatprep.subr.mxu0 0.0
    %1199 = vmatpush1.msra.mxu0 0.0
    %1200 = vmatprep.subr.mxu0 0.0
    %1201 = vmatpush1.msra.mxu0 0.0
    %1202 = vmatprep.subr.mxu0 0.0
    %1203 = vmatpush1.msra.mxu0 0.0
    %1204 = vmatprep.subr.mxu0 0.0
    %1205 = vmatpush1.msra.mxu0 0.0
    %1206 = vmatprep.subr.mxu0 0.0
    %1207 = vmatpush1.msra.mxu0 0.0
    %1208 = vmatprep.subr.mxu0 0.0
    %1209 = vmatpush1.msra.mxu0 0.0
    %1210 = vmatprep.subr.mxu0 0.0
    %1211 = vmatpush1.msra.mxu0 0.0
    %1212 = vmatprep.subr.mxu0 0.0
    %1213 = vmatpush1.msra.mxu0 0.0
    %1214 = vmatprep.subr.mxu0 0.0
    %1215 = vmatpush1.msra.mxu0 0.0
    %1216 = vmatprep.subr.mxu0 0.0
    %1217 = vmatpush1.msra.mxu0 0.0
    %1218 = vmatprep.subr.mxu0 0.0
    %1219 = vmatpush1.msra.mxu0 0.0
    %1220 = vmatprep.subr.mxu0 0.0
    %1221 = vmatpush1.msra.mxu0 0.0
    %1222 = vmatprep.subr.mxu0 0.0
    %1223 = vmatpush1.msra.mxu0 0.0
    %1224 = vmatprep.subr.mxu0 0.0
    %1225 = vmatpush1.msra.mxu0 0.0
    %1226 = vmatprep.subr.mxu0 0.0
    %1227 = vmatpush1.msra.mxu0 0.0
    %1228 = vmatprep.subr.mxu0 0.0
    %1229 = vmatpush1.msra.mxu0 0.0
    %1230 = vmatprep.mubr.f32.mxu0 0.0
    %1231 = vmatmul.mubr.f32.gmra.mrb[0].mxu0 %v1164
    %v1232 = vpop.f32.mrb[0].mxu0
    %v1233 = vadd.f32 0.0, %v1232
    %v1234 = vpop.f32.mrb[0].mxu0
    %1235 = vdwg.mxu0
    %v1236 = vadd.f32 %v1160, %v1233
    %v1237 = vld [vmem:[#allocation26 + $0x20] sm:$0xff]
    %v1238 = vld [vmem:[#allocation26 + $0x28] sm:$0xff]
    %v1240 = vsel %vm286, %v725, 0
    %1242 = vmatprep.subr.mxu0 0.0
    %1243 = vmatpush1.msra.mxu0 %v1237
    %1244 = vmatprep.subr.mxu0 0.0
    %1245 = vmatpush1.msra.mxu0 %v1238
    %1246 = vmatprep.subr.mxu0 0.0
    %1247 = vmatpush1.msra.mxu0 0.0
    %1248 = vmatprep.subr.mxu0 0.0
    %1249 = vmatpush1.msra.mxu0 0.0
    %1250 = vmatprep.subr.mxu0 0.0
    %1251 = vmatpush1.msra.mxu0 0.0
    %1252 = vmatprep.subr.mxu0 0.0
    %1253 = vmatpush1.msra.mxu0 0.0
    %1254 = vmatprep.subr.mxu0 0.0
    %1255 = vmatpush1.msra.mxu0 0.0
    %1256 = vmatprep.subr.mxu0 0.0
    %1257 = vmatpush1.msra.mxu0 0.0
    %1258 = vmatprep.subr.mxu0 0.0
    %1259 = vmatpush1.msra.mxu0 0.0
    %1260 = vmatprep.subr.mxu0 0.0
    %1261 = vmatpush1.msra.mxu0 0.0
    %1262 = vmatprep.subr.mxu0 0.0
    %1263 = vmatpush1.msra.mxu0 0.0
    %1264 = vmatprep.subr.mxu0 0.0
    %1265 = vmatpush1.msra.mxu0 0.0
    %1266 = vmatprep.subr.mxu0 0.0
    %1267 = vmatpush1.msra.mxu0 0.0
    %1268 = vmatprep.subr.mxu0 0.0
    %1269 = vmatpush1.msra.mxu0 0.0
    %1270 = vmatprep.subr.mxu0 0.0
    %1271 = vmatpush1.msra.mxu0 0.0
    %1272 = vmatprep.subr.mxu0 0.0
    %1273 = vmatpush1.msra.mxu0 0.0
    %1274 = vmatprep.subr.mxu0 0.0
    %1275 = vmatpush1.msra.mxu0 0.0
    %1276 = vmatprep.subr.mxu0 0.0
    %1277 = vmatpush1.msra.mxu0 0.0
    %1278 = vmatprep.subr.mxu0 0.0
    %1279 = vmatpush1.msra.mxu0 0.0
    %1280 = vmatprep.subr.mxu0 0.0
    %1281 = vmatpush1.msra.mxu0 0.0
    %1282 = vmatprep.subr.mxu0 0.0
    %1283 = vmatpush1.msra.mxu0 0.0
    %1284 = vmatprep.subr.mxu0 0.0
    %1285 = vmatpush1.msra.mxu0 0.0
    %1286 = vmatprep.subr.mxu0 0.0
    %1287 = vmatpush1.msra.mxu0 0.0
    %1288 = vmatprep.subr.mxu0 0.0
    %1289 = vmatpush1.msra.mxu0 0.0
    %1290 = vmatprep.subr.mxu0 0.0
    %1291 = vmatpush1.msra.mxu0 0.0
    %1292 = vmatprep.subr.mxu0 0.0
    %1293 = vmatpush1.msra.mxu0 0.0
    %1294 = vmatprep.subr.mxu0 0.0
    %1295 = vmatpush1.msra.mxu0 0.0
    %1296 = vmatprep.subr.mxu0 0.0
    %1297 = vmatpush1.msra.mxu0 0.0
    %1298 = vmatprep.subr.mxu0 0.0
    %1299 = vmatpush1.msra.mxu0 0.0
    %1300 = vmatprep.subr.mxu0 0.0
    %1301 = vmatpush1.msra.mxu0 0.0
    %1302 = vmatprep.subr.mxu0 0.0
    %1303 = vmatpush1.msra.mxu0 0.0
    %1304 = vmatprep.subr.mxu0 0.0
    %1305 = vmatpush1.msra.mxu0 0.0
    %1306 = vmatprep.mubr.f32.mxu0 0.0
    %1307 = vmatmul.mubr.f32.gmra.mrb[0].mxu0 %v1240
    %v1308 = vpop.f32.mrb[0].mxu0
    %v1309 = vadd.f32 0.0, %v1308
    %v1310 = vpop.f32.mrb[0].mxu0
    %1311 = vdwg.mxu0
    %v1312 = vadd.f32 %v1236, %v1309
    %v1313 = vld [vmem:[#allocation26 + $0x30] sm:$0xff]
    %v1314 = vld [vmem:[#allocation26 + $0x38] sm:$0xff]
    %v1316 = vsel %vm286, %v1075, 0
    %1318 = vmatprep.subr.mxu0 0.0
    %1319 = vmatpush1.msra.mxu0 %v1313
    %1320 = vmatprep.subr.mxu0 0.0
    %1321 = vmatpush1.msra.mxu0 %v1314
    %1322 = vmatprep.subr.mxu0 0.0
    %1323 = vmatpush1.msra.mxu0 0.0
    %1324 = vmatprep.subr.mxu0 0.0
    %1325 = vmatpush1.msra.mxu0 0.0
    %1326 = vmatprep.subr.mxu0 0.0
    %1327 = vmatpush1.msra.mxu0 0.0
    %1328 = vmatprep.subr.mxu0 0.0
    %1329 = vmatpush1.msra.mxu0 0.0
    %1330 = vmatprep.subr.mxu0 0.0
    %1331 = vmatpush1.msra.mxu0 0.0
    %1332 = vmatprep.subr.mxu0 0.0
    %1333 = vmatpush1.msra.mxu0 0.0
    %1334 = vmatprep.subr.mxu0 0.0
    %1335 = vmatpush1.msra.mxu0 0.0
    %1336 = vmatprep.subr.mxu0 0.0
    %1337 = vmatpush1.msra.mxu0 0.0
    %1338 = vmatprep.subr.mxu0 0.0
    %1339 = vmatpush1.msra.mxu0 0.0
    %1340 = vmatprep.subr.mxu0 0.0
    %1341 = vmatpush1.msra.mxu0 0.0
    %1342 = vmatprep.subr.mxu0 0.0
    %1343 = vmatpush1.msra.mxu0 0.0
    %1344 = vmatprep.subr.mxu0 0.0
    %1345 = vmatpush1.msra.mxu0 0.0
    %1346 = vmatprep.subr.mxu0 0.0
    %1347 = vmatpush1.msra.mxu0 0.0
    %1348 = vmatprep.subr.mxu0 0.0
    %1349 = vmatpush1.msra.mxu0 0.0
    %1350 = vmatprep.subr.mxu0 0.0
    %1351 = vmatpush1.msra.mxu0 0.0
    %1352 = vmatprep.subr.mxu0 0.0
    %1353 = vmatpush1.msra.mxu0 0.0
    %1354 = vmatprep.subr.mxu0 0.0
    %1355 = vmatpush1.msra.mxu0 0.0
    %1356 = vmatprep.subr.mxu0 0.0
    %1357 = vmatpush1.msra.mxu0 0.0
    %1358 = vmatprep.subr.mxu0 0.0
    %1359 = vmatpush1.msra.mxu0 0.0
    %1360 = vmatprep.subr.mxu0 0.0
    %1361 = vmatpush1.msra.mxu0 0.0
    %1362 = vmatprep.subr.mxu0 0.0
    %1363 = vmatpush1.msra.mxu0 0.0
    %1364 = vmatprep.subr.mxu0 0.0
    %1365 = vmatpush1.msra.mxu0 0.0
    %1366 = vmatprep.subr.mxu0 0.0
    %1367 = vmatpush1.msra.mxu0 0.0
    %1368 = vmatprep.subr.mxu0 0.0
    %1369 = vmatpush1.msra.mxu0 0.0
    %1370 = vmatprep.subr.mxu0 0.0
    %1371 = vmatpush1.msra.mxu0 0.0
    %1372 = vmatprep.subr.mxu0 0.0
    %1373 = vmatpush1.msra.mxu0 0.0
    %1374 = vmatprep.subr.mxu0 0.0
    %1375 = vmatpush1.msra.mxu0 0.0
    %1376 = vmatprep.subr.mxu0 0.0
    %1377 = vmatpush1.msra.mxu0 0.0
    %1378 = vmatprep.subr.mxu0 0.0
    %1379 = vmatpush1.msra.mxu0 0.0
    %1380 = vmatprep.subr.mxu0 0.0
    %1381 = vmatpush1.msra.mxu0 0.0
    %1382 = vmatprep.mubr.f32.mxu0 0.0
    %1383 = vmatmul.mubr.f32.gmra.mrb[0].mxu0 %v1316
    %v1384 = vpop.f32.mrb[0].mxu0
    %v1385 = vadd.f32 0.0, %v1384
    %v1386 = vpop.f32.mrb[0].mxu0
    %1387 = vdwg.mxu0
    %v1388 = vadd.f32 %v1312, %v1385
    %v1389 = vmax.f32 %v1388, 0.0
    %v1390 = vld [vmem:[#allocation29] sm:$0xff]
    %v1391 = vld [vmem:[#allocation29 + $0x8] sm:$0xff]
    %v1392 = vld [vmem:[#allocation29 + $0x10] sm:$0xff]
    %v1393 = vld [vmem:[#allocation29 + $0x18] sm:$0xff]
    %v1394 = vld [vmem:[#allocation2] sm:$0x1]
    %v1396 = vlaneseq
    %v1397 = vshrl.u32 %v1396, 7
    %v1398 = vsub.s32 0, %v1397
    %v1399 = vrot.slane %v1394, %v1398
    %v1402 = vsel %vm372, %v1389, 0
    %1404 = vmatprep.subr.mxu0 0.0
    %1405 = vmatpush1.msra.mxu0 %v1390
    %1406 = vmatprep.subr.mxu0 0.0
    %1407 = vmatpush1.msra.mxu0 %v1391
    %1408 = vmatprep.subr.mxu0 0.0
    %1409 = vmatpush1.msra.mxu0 %v1392
    %1410 = vmatprep.subr.mxu0 0.0
    %1411 = vmatpush1.msra.mxu0 %v1393
    %1412 = vmatprep.subr.mxu0 0.0
    %1413 = vmatpush1.msra.mxu0 0.0
    %1414 = vmatprep.subr.mxu0 0.0
    %1415 = vmatpush1.msra.mxu0 0.0
    %1416 = vmatprep.subr.mxu0 0.0
    %1417 = vmatpush1.msra.mxu0 0.0
    %1418 = vmatprep.subr.mxu0 0.0
    %1419 = vmatpush1.msra.mxu0 0.0
    %1420 = vmatprep.subr.mxu0 0.0
    %1421 = vmatpush1.msra.mxu0 0.0
    %1422 = vmatprep.subr.mxu0 0.0
    %1423 = vmatpush1.msra.mxu0 0.0
    %1424 = vmatprep.subr.mxu0 0.0
    %1425 = vmatpush1.msra.mxu0 0.0
    %1426 = vmatprep.subr.mxu0 0.0
    %1427 = vmatpush1.msra.mxu0 0.0
    %1428 = vmatprep.subr.mxu0 0.0
    %1429 = vmatpush1.msra.mxu0 0.0
    %1430 = vmatprep.subr.mxu0 0.0
    %1431 = vmatpush1.msra.mxu0 0.0
    %1432 = vmatprep.subr.mxu0 0.0
    %1433 = vmatpush1.msra.mxu0 0.0
    %1434 = vmatprep.subr.mxu0 0.0
    %1435 = vmatpush1.msra.mxu0 0.0
    %1436 = vmatprep.subr.mxu0 0.0
    %1437 = vmatpush1.msra.mxu0 0.0
    %1438 = vmatprep.subr.mxu0 0.0
    %1439 = vmatpush1.msra.mxu0 0.0
    %1440 = vmatprep.subr.mxu0 0.0
    %1441 = vmatpush1.msra.mxu0 0.0
    %1442 = vmatprep.subr.mxu0 0.0
    %1443 = vmatpush1.msra.mxu0 0.0
    %1444 = vmatprep.subr.mxu0 0.0
    %1445 = vmatpush1.msra.mxu0 0.0
    %1446 = vmatprep.subr.mxu0 0.0
    %1447 = vmatpush1.msra.mxu0 0.0
    %1448 = vmatprep.subr.mxu0 0.0
    %1449 = vmatpush1.msra.mxu0 0.0
    %1450 = vmatprep.subr.mxu0 0.0
    %1451 = vmatpush1.msra.mxu0 0.0
    %1452 = vmatprep.subr.mxu0 0.0
    %1453 = vmatpush1.msra.mxu0 0.0
    %1454 = vmatprep.subr.mxu0 0.0
    %1455 = vmatpush1.msra.mxu0 0.0
    %1456 = vmatprep.subr.mxu0 0.0
    %1457 = vmatpush1.msra.mxu0 0.0
    %1458 = vmatprep.subr.mxu0 0.0
    %1459 = vmatpush1.msra.mxu0 0.0
    %1460 = vmatprep.subr.mxu0 0.0
    %1461 = vmatpush1.msra.mxu0 0.0
    %1462 = vmatprep.subr.mxu0 0.0
    %1463 = vmatpush1.msra.mxu0 0.0
    %1464 = vmatprep.subr.mxu0 0.0
    %1465 = vmatpush1.msra.mxu0 0.0
    %1466 = vmatprep.subr.mxu0 0.0
    %1467 = vmatpush1.msra.mxu0 0.0
    %1468 = vmatprep.mubr.f32.mxu0 0.0
    %1469 = vmatmul.mubr.f32.gmra.mrb[0].mxu0 %v1402
    %v1470 = vpop.f32.mrb[0].mxu0
    %v1471 = vadd.f32 %v1399, %v1470
    %v1472 = vpop.f32.mrb[0].mxu0
    %1473 = vdwg.mxu0
    %v1474 = vxor.u32 %v1471, 2147483648
    %v1475 = vmul.f32 %v1474, 1.442695
    %v1476 = vpow.pop %v1475
    %v1477 = vadd.f32 %v1476, 1.0
    %v1478 = vrcp.pop %v1477
    %v1479 = vmul.f32 1.0, %v1478
    %vm1480 = vcmask 3072
    %1481 = vst.msk [vmem:[#allocation30] sm:$0xf] %vm1480, %v1479
    // Predicated region
    $region142: #{tpu_custom_call.1} parent=1 // pred_check
      _
    $region143: #{tpu_custom_call.1} parent=1 // pred_check_branch
      %1483 = sbr.rel (0) target = $region145
    $region144: #{tpu_custom_call.1} parent=1 // pred_region
      %s1485 = ssub.s32 64, 64
      %1486 = vsyncadd [#allocation5], %s1485
      %s1488 = sshll.u32 [#allocation30], 4
      %s1489 = int_to_ptr.vmem [resolvable:$true] %s1488
      %1491 = dma.vmem_to_hbm [thread:$0]  %s1489, 64, %s18, [#allocation5]
    $region145: #{tpu_custom_call.1} parent=1 // pred_fallthru
      _
    // Predicated region
    $region146: #{tpu_custom_call.1} parent=1 // pred_check
      _
    $region147: #{tpu_custom_call.1} parent=1 // pred_check_branch
      %1493 = sbr.rel (0) target = $region149
    $region148: #{tpu_custom_call.1} parent=1 // pred_region
      %1494 = dma.done [#allocation5], 64
    $region149: #{tpu_custom_call.1} parent=1 // pred_fallthru
      _
    %1495 = vsyncpa [#allocation4], 1
    %1496 = vsyncpa [#allocation7], 1
    %1497 = vsyncpa [#allocation10], 1
    %1498 = vsyncpa [#allocation13], 1
    %1499 = vsyncpa [#allocation16], 1
    %1500 = vsyncpa [#allocation19], 1
    %1501 = vsyncpa [#allocation22], 1
    %1502 = vsyncpa [#allocation25], 1
    %1503 = vsyncpa [#allocation28], 1
    %1504 = vsyncpa [#allocation5], 1

</llo_original>
